<compile_context>
chip_gen: v7x
topology: tpu7x:2x2x1
jax: 0.10.0
libtpu: 0.0.40
codegen_flags: <defaults>
</compile_context>

<pallas_src>
import numpy as np
from functools import partial

import jax
import jax.numpy as jnp
from jax.experimental import pallas as pl
from jax.experimental.pallas import tpu as pltpu

NUM_CLASSES = 4   # docstring default ("default is 4")
PAD_N = 128       # lane-dense padded width for logits / one-hot outputs


def _round_up(n, m):
    return ((n + m - 1) // m) * m


def nn_model_kernel(ncls, x_ref, w1_ref, b1_ref, w2_ref, b2_ref,
                    wfc_ref, bfc_ref, logits_ref, onehot_ref, p1_ref):
    f32 = jnp.float32
    Bt = logits_ref.shape[0]

    # x_ref: (12*Bt, 10), row = h_pad*Bt + b; padded rows 0 and 11 are zeros (conv1 pad=1).
    xv = x_ref[...]

    # ---- conv1 (1->32, 3x3, pad=1): 3 accumulated MXU matmuls, dense over width. ----
    # w1_ref[dy]: (10, 512); output lane n = dj*256 + j*32 + c with w_out = 2*j + dj,
    # so maxpool1's width reduction is a max of two 128-aligned 256-lane halves.
    c1 = (jnp.dot(xv[0 * Bt:10 * Bt], w1_ref[0], preferred_element_type=f32)
          + jnp.dot(xv[1 * Bt:11 * Bt], w1_ref[1], preferred_element_type=f32)
          + jnp.dot(xv[2 * Bt:12 * Bt], w1_ref[2], preferred_element_type=f32))
    # c1: (10*Bt, 512), row = h_out*Bt + b (raw, pre-bias/ReLU)

    # ---- maxpool1: width via the two aligned lane halves, height via aligned row pairs. ----
    wp = jnp.maximum(c1[:, 0:256], c1[:, 256:512])                    # (10*Bt, 256)

    b1v = jnp.broadcast_to(b1_ref[...], (Bt, 256))                    # hoisted broadcast
    p1_ref[0:Bt, :] = jnp.zeros((Bt, 256), f32)                       # zero pad ring (row -1)
    for i in range(5):
        r = jnp.maximum(wp[(2 * i) * Bt:(2 * i + 1) * Bt],
                        wp[(2 * i + 1) * Bt:(2 * i + 2) * Bt])
        # ReLU(max(raw)+bias) == max over window of ReLU(raw+bias): bias is per-channel.
        p1_ref[(i + 1) * Bt:(i + 2) * Bt, :] = jnp.maximum(r + b1v, 0.0)
    # P: (6*Bt, 256), row = i_pad*Bt + b (i_pad = pooled row + 1), lane = j*32 + cin

    # ---- conv2 (32->128, 3x3, pad=1), only output rows/cols 0..3 (pool2 drops row/col 4):
    #      3 accumulated matmuls, LHS = contiguous sublane-aligned row windows of P. ----
    c2 = (jnp.dot(p1_ref[0:4 * Bt, :], w2_ref[0], preferred_element_type=f32)
          + jnp.dot(p1_ref[1 * Bt:5 * Bt, :], w2_ref[1], preferred_element_type=f32)
          + jnp.dot(p1_ref[2 * Bt:6 * Bt, :], w2_ref[2], preferred_element_type=f32))
    # c2: (4*Bt, 512), row = h*Bt + b, lane = w*128 + cout (raw, pre-bias/ReLU)

    # ---- maxpool2 + bias + ReLU + flatten; all slices 8-sublane / 128-lane aligned. ----
    def cblk(h, w):
        return c2[h * Bt:(h + 1) * Bt, w * 128:(w + 1) * 128]

    chunks = []
    for ph in range(2):
        for pw in range(2):
            chunks.append(jnp.maximum(
                jnp.maximum(cblk(2 * ph, 2 * pw), cblk(2 * ph, 2 * pw + 1)),
                jnp.maximum(cblk(2 * ph + 1, 2 * pw), cblk(2 * ph + 1, 2 * pw + 1))))
    feat = jnp.maximum(jnp.concatenate(chunks, axis=1) + b2_ref[...], 0.0)   # (Bt, 512)
    # feat lane = (ph*2+pw)*128 + cout

    # ---- BatchNorm1d (inference, folded) + Linear -> lane-dense (Bt, 128) logits ----
    logits = jnp.dot(feat, wfc_ref[...], preferred_element_type=f32) + bfc_ref[...]
    logits_ref[...] = logits

    # ---- one_hot(argmax) over the real `ncls` columns (first-max tie-break) ----
    col = jax.lax.broadcasted_iota(jnp.int32, logits.shape, 1)
    ml = jnp.where(col < ncls, logits, -jnp.inf)
    row_max = jnp.max(ml, axis=1, keepdims=True)
    first_idx = jnp.min(jnp.where(ml == row_max, col, PAD_N), axis=1, keepdims=True)
    onehot_ref[...] = (col == first_idx).astype(f32)


def prepare_params(params, eps=1e-5):
    """One-time parameter re-layout (hoisted out of the per-call path)."""
    ncls = int(np.asarray(params['fc_b']).shape[0])
    assert ncls <= PAD_N

    c1w = np.asarray(params['conv1_w'], np.float32)      # (32, 1, 3, 3)
    c1b = np.asarray(params['conv1_b'], np.float32)      # (32,)
    c2w = np.asarray(params['conv2_w'], np.float32)      # (128, 32, 3, 3)
    c2b = np.asarray(params['conv2_b'], np.float32)      # (128,)
    gamma = np.asarray(params['bn_gamma'], np.float32)
    beta = np.asarray(params['bn_beta'], np.float32)
    mean = np.asarray(params['bn_mean'], np.float32)
    var = np.asarray(params['bn_var'], np.float32)
    fcw = np.asarray(params['fc_w'], np.float32)         # (ncls, 512)
    fcb = np.asarray(params['fc_b'], np.float32)         # (ncls,)

    # conv1: dense-over-width weights, one (10, 512) matrix per kernel row dy.
    # column n = dj*256 + j*32 + c with w_out = 2*j + dj; columns >= 160 inside each half are 0.
    w1 = np.zeros((3, 10, 512), np.float32)
    for dy in range(3):
        for w_in in range(10):
            for dj in range(2):
                for j in range(5):
                    dx = w_in - (2 * j + dj) + 1
                    if 0 <= dx < 3:
                        n0 = dj * 256 + j * 32
                        w1[dy, w_in, n0:n0 + 32] = c1w[:, 0, dy, dx]
    b1 = np.zeros((1, 256), np.float32)
    for j in range(5):
        b1[0, j * 32:(j + 1) * 32] = c1b

    # conv2: dense-over-width weights on the padded pool1 scratch layout.
    # rows = j*32 + cin (rows 160..255 zero), cols = w*128 + cout, one matrix per dy.
    w2 = np.zeros((3, 256, 512), np.float32)
    for dy in range(3):
        for j in range(5):
            for w in range(4):
                dx = j - w + 1
                if 0 <= dx < 3:
                    w2[dy, j * 32:(j + 1) * 32, w * 128:(w + 1) * 128] = c2w[:, :, dy, dx].T
    b2 = np.tile(c2b, 4).reshape(1, 512).astype(np.float32)

    # BatchNorm (inference mode) folded into the FC layer, with the flatten-order permutation.
    s = gamma / np.sqrt(var + eps)            # torch flat order p_t = cout*4 + (ph*2+pw)
    t = beta - mean * s
    p_k = np.arange(512)                      # kernel lane order p_k = (ph*2+pw)*128 + cout
    perm = (p_k % 128) * 4 + (p_k // 128)     # p_t corresponding to p_k
    wfc = np.zeros((512, PAD_N), np.float32)
    wfc[:, :ncls] = s[perm][:, None] * fcw.T[perm, :]
    bfc = np.zeros((1, PAD_N), np.float32)
    bfc[0, :ncls] = fcw @ t + fcb

    return dict(ncls=ncls,
                w1=jnp.asarray(w1), b1=jnp.asarray(b1),
                w2=jnp.asarray(w2), b2=jnp.asarray(b2),
                wfc=jnp.asarray(wfc), bfc=jnp.asarray(bfc))


def nn_model_forward(x_nchw, prepped, *, batch_tile=32):
    """x_nchw: (B,1,10,10) float32 (PyTorch layout). Returns (logits, one_hot)."""
    B = x_nchw.shape[0]
    ncls = prepped['ncls']
    x = x_nchw.reshape(B, 10, 10).astype(jnp.float32)    # C==1: NCHW->NHW is a free reshape

    # batch tile: multiple of 8; force >=2 grid steps when B>8 so both v7x TensorCores get
    # work (costs one ~0.35us extra grid step on single-TC v5e/v6e -- negligible here).
    bt = min(_round_up(batch_tile, 8), _round_up(B, 8))
    if B > 8 and -(-B // bt) < 2:
        bt = _round_up(-(-B // 2), 8)
    G = -(-B // bt)
    B_pad = G * bt

    # Lay the zero-padded input out as rows h_pad*bt + b_local per batch block, so conv1's
    # three dy windows are contiguous, sublane-aligned row slices inside the kernel.
    xT = jnp.transpose(x, (1, 0, 2))                                          # (10, B, 10)
    xpad = jnp.zeros((12, B_pad, 10), jnp.float32).at[1:11, :B, :].set(xT)
    xb = xpad.reshape(12, G, bt, 10).swapaxes(0, 1).reshape(G, 12 * bt, 10)

    def const(shape):
        nd = len(shape)
        return pl.BlockSpec(shape, lambda i, _nd=nd: (0,) * _nd)

    logits_p, onehot_p = pl.pallas_call(
        partial(nn_model_kernel, ncls),
        out_shape=(jax.ShapeDtypeStruct((B_pad, PAD_N), jnp.float32),
                   jax.ShapeDtypeStruct((B_pad, PAD_N), jnp.float32)),
        grid=(G,),
        in_specs=[pl.BlockSpec((None, 12 * bt, 10), lambda i: (i, 0, 0)),
                  const((3, 10, 512)), const((1, 256)),
                  const((3, 256, 512)), const((1, 512)),
                  const((512, PAD_N)), const((1, PAD_N))],
        out_specs=(pl.BlockSpec((bt, PAD_N), lambda i: (i, 0)),
                   pl.BlockSpec((bt, PAD_N), lambda i: (i, 0))),
        scratch_shapes=[pltpu.VMEM((6 * bt, 256), jnp.float32)],   # padded pool1 feature map
        compiler_params=pltpu.CompilerParams(
            dimension_semantics=("parallel",),
            vmem_limit_bytes=16 * 1024 * 1024),
    )(xb, prepped['w1'], prepped['b1'], prepped['w2'], prepped['b2'],
      prepped['wfc'], prepped['bfc'])

    return logits_p[:B, :ncls], onehot_p[:B, :ncls]


def reference_forward(x, params):
    """Pure-JAX reference with PyTorch layouts/semantics (eval-mode BN)."""
    def conv(inp, w, b):
        y = jax.lax.conv_general_dilated(
            inp, w, (1, 1), ((1, 1), (1, 1)),
            dimension_numbers=('NCHW', 'OIHW', 'NCHW'),
            precision=jax.lax.Precision.HIGHEST)
        return y + b[None, :, None, None]

    def pool(a):
        return jax.lax.reduce_window(a, -jnp.inf, jax.lax.max,
                                     (1, 1, 2, 2), (1, 1, 2, 2), 'VALID')

    a = pool(jnp.maximum(conv(x, params['conv1_w'], params['conv1_b']), 0.0))
    a = pool(jnp.maximum(conv(a, params['conv2_w'], params['conv2_b']), 0.0))
    f = a.reshape(a.shape[0], -1)                                  # torch CHW flatten
    eps = 1e-5
    z = (f - params['bn_mean']) / jnp.sqrt(params['bn_var'] + eps) * params['bn_gamma'] \
        + params['bn_beta']
    return jnp.dot(z, params['fc_w'].T, precision=jax.lax.Precision.HIGHEST) + params['fc_b']


if __name__ == "__main__":
    key = jax.random.PRNGKey(0)
    ks = jax.random.split(key, 11)
    B = 2
    params = dict(
        conv1_w=0.1 * jax.random.normal(ks[0], (32, 1, 3, 3), jnp.float32),
        conv1_b=0.1 * jax.random.normal(ks[1], (32,), jnp.float32),
        conv2_w=0.1 * jax.random.normal(ks[2], (128, 32, 3, 3), jnp.float32),
        conv2_b=0.1 * jax.random.normal(ks[3], (128,), jnp.float32),
        bn_gamma=jax.random.uniform(ks[4], (512,), jnp.float32, 0.5, 1.5),
        bn_beta=0.1 * jax.random.normal(ks[5], (512,), jnp.float32),
        bn_mean=0.1 * jax.random.normal(ks[6], (512,), jnp.float32),
        bn_var=jax.random.uniform(ks[7], (512,), jnp.float32, 0.5, 1.5),
        fc_w=0.1 * jax.random.normal(ks[8], (NUM_CLASSES, 512), jnp.float32),
        fc_b=0.1 * jax.random.normal(ks[9], (NUM_CLASSES,), jnp.float32),
    )
    x = jax.random.normal(ks[10], (B, 1, 10, 10), jnp.float32)

    prepped = prepare_params(params)                 # one-time layout prep (not per call)
    logits, one_hot = jax.block_until_ready(nn_model_forward(x, prepped))

    # sanity vs pure-JAX reference (loose tol: MXU f32 accumulation order differs)
    ref_logits = reference_forward(x, params)
    assert logits.shape == (B, NUM_CLASSES) and one_hot.shape == (B, NUM_CLASSES)
    assert jnp.allclose(logits, ref_logits, atol=5e-2, rtol=5e-2)
    assert bool(jnp.all(one_hot.sum(axis=1) == 1.0))
    assert bool(jnp.all(jnp.argmax(one_hot, axis=1) == jnp.argmax(ref_logits, axis=1)))
    print("KERNEL_OK")
</pallas_src>

<mosaic_0001>
module attributes {stable_mosaic.version = 11 : i64} {
  func.func @nn_model_kernel(%arg0: i32, %arg1: memref<1x96x10xf32, #tpu.memory_space<vmem>>, %arg2: memref<3x10x512xf32, #tpu.memory_space<vmem>>, %arg3: memref<1x256xf32, #tpu.memory_space<vmem>>, %arg4: memref<3x256x512xf32, #tpu.memory_space<vmem>>, %arg5: memref<1x512xf32, #tpu.memory_space<vmem>>, %arg6: memref<512x128xf32, #tpu.memory_space<vmem>>, %arg7: memref<1x128xf32, #tpu.memory_space<vmem>>, %arg8: memref<8x128xf32, #tpu.memory_space<vmem>>, %arg9: memref<8x128xf32, #tpu.memory_space<vmem>>, %arg10: memref<48x256xf32, #tpu.memory_space<vmem>>) attributes {dimension_semantics = [#tpu.dimension_semantics<parallel>], iteration_bounds = array<i64: 1>, scalar_prefetch = 0 : i64, scratch_operands = 1 : i64, tpu.core_type = #tpu.core_type<tc>, window_params = [{transform_indices = @transform_0, window_bounds = array<i64: 1, 96, 10>}, {pipeline_mode = #tpu.pipeline_mode<synchronous>, transform_indices = @transform_1, window_bounds = array<i64: 3, 10, 512>}, {pipeline_mode = #tpu.pipeline_mode<synchronous>, transform_indices = @transform_2, window_bounds = array<i64: 1, 256>}, {pipeline_mode = #tpu.pipeline_mode<synchronous>, transform_indices = @transform_3, window_bounds = array<i64: 3, 256, 512>}, {pipeline_mode = #tpu.pipeline_mode<synchronous>, transform_indices = @transform_4, window_bounds = array<i64: 1, 512>}, {pipeline_mode = #tpu.pipeline_mode<synchronous>, transform_indices = @transform_5, window_bounds = array<i64: 512, 128>}, {pipeline_mode = #tpu.pipeline_mode<synchronous>, transform_indices = @transform_6, window_bounds = array<i64: 1, 128>}, {transform_indices = @transform_7, window_bounds = array<i64: 8, 128>}, {transform_indices = @transform_8, window_bounds = array<i64: 8, 128>}]} {
    %c0 = arith.constant 0 : index
    %c0_0 = arith.constant 0 : index
    %c0_1 = arith.constant 0 : index
    %0 = vector.load %arg1[%c0, %c0_0, %c0_1] : memref<1x96x10xf32, #tpu.memory_space<vmem>>, vector<1x96x10xf32>
    %1 = vector.shape_cast %0 : vector<1x96x10xf32> to vector<96x10xf32>
    %2 = vector.extract_strided_slice %1 {offsets = [0, 0], sizes = [80, 10], strides = [1, 1]} : vector<96x10xf32> to vector<80x10xf32>
    %c0_2 = arith.constant 0 : index
    %c0_3 = arith.constant 0 : index
    %c0_4 = arith.constant 0 : index
    %3 = vector.load %arg2[%c0_2, %c0_3, %c0_4] : memref<3x10x512xf32, #tpu.memory_space<vmem>>, vector<1x10x512xf32>
    %4 = vector.shape_cast %3 : vector<1x10x512xf32> to vector<10x512xf32>
    %cst = arith.constant dense<0.000000e+00> : vector<80x512xf32>
    %5 = tpu.matmul %2, %4, %cst {dimension_numbers = #tpu.dot_dimension_numbers<[1], [0], [0], [1], [0, 0, 1, 1], [], []>} : vector<80x10xf32>, vector<10x512xf32>, vector<80x512xf32> -> vector<80x512xf32>
    %6 = vector.extract_strided_slice %1 {offsets = [8, 0], sizes = [80, 10], strides = [1, 1]} : vector<96x10xf32> to vector<80x10xf32>
    %c1 = arith.constant 1 : index
    %c0_5 = arith.constant 0 : index
    %c0_6 = arith.constant 0 : index
    %7 = vector.load %arg2[%c1, %c0_5, %c0_6] : memref<3x10x512xf32, #tpu.memory_space<vmem>>, vector<1x10x512xf32>
    %8 = vector.shape_cast %7 : vector<1x10x512xf32> to vector<10x512xf32>
    %cst_7 = arith.constant dense<0.000000e+00> : vector<80x512xf32>
    %9 = tpu.matmul %6, %8, %cst_7 {dimension_numbers = #tpu.dot_dimension_numbers<[1], [0], [0], [1], [0, 0, 1, 1], [], []>} : vector<80x10xf32>, vector<10x512xf32>, vector<80x512xf32> -> vector<80x512xf32>
    %10 = arith.addf %5, %9 : vector<80x512xf32>
    %11 = vector.extract_strided_slice %1 {offsets = [16, 0], sizes = [80, 10], strides = [1, 1]} : vector<96x10xf32> to vector<80x10xf32>
    %c2 = arith.constant 2 : index
    %c0_8 = arith.constant 0 : index
    %c0_9 = arith.constant 0 : index
    %12 = vector.load %arg2[%c2, %c0_8, %c0_9] : memref<3x10x512xf32, #tpu.memory_space<vmem>>, vector<1x10x512xf32>
    %13 = vector.shape_cast %12 : vector<1x10x512xf32> to vector<10x512xf32>
    %cst_10 = arith.constant dense<0.000000e+00> : vector<80x512xf32>
    %14 = tpu.matmul %11, %13, %cst_10 {dimension_numbers = #tpu.dot_dimension_numbers<[1], [0], [0], [1], [0, 0, 1, 1], [], []>} : vector<80x10xf32>, vector<10x512xf32>, vector<80x512xf32> -> vector<80x512xf32>
    %15 = arith.addf %10, %14 : vector<80x512xf32>
    %16 = vector.extract_strided_slice %15 {offsets = [0, 0], sizes = [80, 256], strides = [1, 1]} : vector<80x512xf32> to vector<80x256xf32>
    %17 = vector.extract_strided_slice %15 {offsets = [0, 256], sizes = [80, 256], strides = [1, 1]} : vector<80x512xf32> to vector<80x256xf32>
    %18 = arith.maximumf %16, %17 : vector<80x256xf32>
    %c0_11 = arith.constant 0 : index
    %c0_12 = arith.constant 0 : index
    %19 = vector.load %arg3[%c0_11, %c0_12] : memref<1x256xf32, #tpu.memory_space<vmem>>, vector<1x256xf32>
    %20 = vector.shape_cast %19 : vector<1x256xf32> to vector<1x256xf32>
    %21 = vector.broadcast %20 : vector<1x256xf32> to vector<8x256xf32>
    %cst_13 = arith.constant 0.000000e+00 : f32
    %22 = vector.broadcast %cst_13 : f32 to vector<8x256xf32>
    %c0_14 = arith.constant 0 : index
    %c0_15 = arith.constant 0 : index
    %23 = vector.load %arg10[%c0_14, %c0_15] : memref<48x256xf32, #tpu.memory_space<vmem>>, vector<8x256xf32>
    tpu.vector_store %arg10[%c0_14, %c0_15], %22 {strides = array<i32>} : memref<48x256xf32, #tpu.memory_space<vmem>>, vector<8x256xf32>,
    %24 = vector.extract_strided_slice %18 {offsets = [0, 0], sizes = [8, 256], strides = [1, 1]} : vector<80x256xf32> to vector<8x256xf32>
    %25 = vector.extract_strided_slice %18 {offsets = [8, 0], sizes = [8, 256], strides = [1, 1]} : vector<80x256xf32> to vector<8x256xf32>
    %26 = arith.maximumf %24, %25 : vector<8x256xf32>
    %27 = arith.addf %26, %21 : vector<8x256xf32>
    %cst_16 = arith.constant 0.000000e+00 : f32
    %28 = vector.broadcast %cst_16 : f32 to vector<8x256xf32>
    %29 = arith.maximumf %27, %28 : vector<8x256xf32>
    %c8 = arith.constant 8 : index
    %c0_17 = arith.constant 0 : index
    %30 = vector.load %arg10[%c8, %c0_17] : memref<48x256xf32, #tpu.memory_space<vmem>>, vector<8x256xf32>
    tpu.vector_store %arg10[%c8, %c0_17], %29 {strides = array<i32>} : memref<48x256xf32, #tpu.memory_space<vmem>>, vector<8x256xf32>,
    %31 = vector.extract_strided_slice %18 {offsets = [16, 0], sizes = [8, 256], strides = [1, 1]} : vector<80x256xf32> to vector<8x256xf32>
    %32 = vector.extract_strided_slice %18 {offsets = [24, 0], sizes = [8, 256], strides = [1, 1]} : vector<80x256xf32> to vector<8x256xf32>
    %33 = arith.maximumf %31, %32 : vector<8x256xf32>
    %34 = arith.addf %33, %21 : vector<8x256xf32>
    %cst_18 = arith.constant 0.000000e+00 : f32
    %35 = vector.broadcast %cst_18 : f32 to vector<8x256xf32>
    %36 = arith.maximumf %34, %35 : vector<8x256xf32>
    %c16 = arith.constant 16 : index
    %c0_19 = arith.constant 0 : index
    %37 = vector.load %arg10[%c16, %c0_19] : memref<48x256xf32, #tpu.memory_space<vmem>>, vector<8x256xf32>
    tpu.vector_store %arg10[%c16, %c0_19], %36 {strides = array<i32>} : memref<48x256xf32, #tpu.memory_space<vmem>>, vector<8x256xf32>,
    %38 = vector.extract_strided_slice %18 {offsets = [32, 0], sizes = [8, 256], strides = [1, 1]} : vector<80x256xf32> to vector<8x256xf32>
    %39 = vector.extract_strided_slice %18 {offsets = [40, 0], sizes = [8, 256], strides = [1, 1]} : vector<80x256xf32> to vector<8x256xf32>
    %40 = arith.maximumf %38, %39 : vector<8x256xf32>
    %41 = arith.addf %40, %21 : vector<8x256xf32>
    %cst_20 = arith.constant 0.000000e+00 : f32
    %42 = vector.broadcast %cst_20 : f32 to vector<8x256xf32>
    %43 = arith.maximumf %41, %42 : vector<8x256xf32>
    %c24 = arith.constant 24 : index
    %c0_21 = arith.constant 0 : index
    %44 = vector.load %arg10[%c24, %c0_21] : memref<48x256xf32, #tpu.memory_space<vmem>>, vector<8x256xf32>
    tpu.vector_store %arg10[%c24, %c0_21], %43 {strides = array<i32>} : memref<48x256xf32, #tpu.memory_space<vmem>>, vector<8x256xf32>,
    %45 = vector.extract_strided_slice %18 {offsets = [48, 0], sizes = [8, 256], strides = [1, 1]} : vector<80x256xf32> to vector<8x256xf32>
    %46 = vector.extract_strided_slice %18 {offsets = [56, 0], sizes = [8, 256], strides = [1, 1]} : vector<80x256xf32> to vector<8x256xf32>
    %47 = arith.maximumf %45, %46 : vector<8x256xf32>
    %48 = arith.addf %47, %21 : vector<8x256xf32>
    %cst_22 = arith.constant 0.000000e+00 : f32
    %49 = vector.broadcast %cst_22 : f32 to vector<8x256xf32>
    %50 = arith.maximumf %48, %49 : vector<8x256xf32>
    %c32 = arith.constant 32 : index
    %c0_23 = arith.constant 0 : index
    %51 = vector.load %arg10[%c32, %c0_23] : memref<48x256xf32, #tpu.memory_space<vmem>>, vector<8x256xf32>
    tpu.vector_store %arg10[%c32, %c0_23], %50 {strides = array<i32>} : memref<48x256xf32, #tpu.memory_space<vmem>>, vector<8x256xf32>,
    %52 = vector.extract_strided_slice %18 {offsets = [64, 0], sizes = [8, 256], strides = [1, 1]} : vector<80x256xf32> to vector<8x256xf32>
    %53 = vector.extract_strided_slice %18 {offsets = [72, 0], sizes = [8, 256], strides = [1, 1]} : vector<80x256xf32> to vector<8x256xf32>
    %54 = arith.maximumf %52, %53 : vector<8x256xf32>
    %55 = arith.addf %54, %21 : vector<8x256xf32>
    %cst_24 = arith.constant 0.000000e+00 : f32
    %56 = vector.broadcast %cst_24 : f32 to vector<8x256xf32>
    %57 = arith.maximumf %55, %56 : vector<8x256xf32>
    %c40 = arith.constant 40 : index
    %c0_25 = arith.constant 0 : index
    %58 = vector.load %arg10[%c40, %c0_25] : memref<48x256xf32, #tpu.memory_space<vmem>>, vector<8x256xf32>
    tpu.vector_store %arg10[%c40, %c0_25], %57 {strides = array<i32>} : memref<48x256xf32, #tpu.memory_space<vmem>>, vector<8x256xf32>,
    %c0_26 = arith.constant 0 : index
    %c0_27 = arith.constant 0 : index
    %59 = vector.load %arg10[%c0_26, %c0_27] : memref<48x256xf32, #tpu.memory_space<vmem>>, vector<32x256xf32>
    %c0_28 = arith.constant 0 : index
    %c0_29 = arith.constant 0 : index
    %c0_30 = arith.constant 0 : index
    %60 = vector.load %arg4[%c0_28, %c0_29, %c0_30] : memref<3x256x512xf32, #tpu.memory_space<vmem>>, vector<1x256x512xf32>
    %61 = vector.shape_cast %60 : vector<1x256x512xf32> to vector<256x512xf32>
    %cst_31 = arith.constant dense<0.000000e+00> : vector<32x512xf32>
    %62 = tpu.matmul %59, %61, %cst_31 {dimension_numbers = #tpu.dot_dimension_numbers<[1], [0], [0], [1], [0, 0, 1, 1], [], []>} : vector<32x256xf32>, vector<256x512xf32>, vector<32x512xf32> -> vector<32x512xf32>
    %c8_32 = arith.constant 8 : index
    %c0_33 = arith.constant 0 : index
    %63 = vector.load %arg10[%c8_32, %c0_33] : memref<48x256xf32, #tpu.memory_space<vmem>>, vector<32x256xf32>
    %c1_34 = arith.constant 1 : index
    %c0_35 = arith.constant 0 : index
    %c0_36 = arith.constant 0 : index
    %64 = vector.load %arg4[%c1_34, %c0_35, %c0_36] : memref<3x256x512xf32, #tpu.memory_space<vmem>>, vector<1x256x512xf32>
    %65 = vector.shape_cast %64 : vector<1x256x512xf32> to vector<256x512xf32>
    %cst_37 = arith.constant dense<0.000000e+00> : vector<32x512xf32>
    %66 = tpu.matmul %63, %65, %cst_37 {dimension_numbers = #tpu.dot_dimension_numbers<[1], [0], [0], [1], [0, 0, 1, 1], [], []>} : vector<32x256xf32>, vector<256x512xf32>, vector<32x512xf32> -> vector<32x512xf32>
    %67 = arith.addf %62, %66 : vector<32x512xf32>
    %c16_38 = arith.constant 16 : index
    %c0_39 = arith.constant 0 : index
    %68 = vector.load %arg10[%c16_38, %c0_39] : memref<48x256xf32, #tpu.memory_space<vmem>>, vector<32x256xf32>
    %c2_40 = arith.constant 2 : index
    %c0_41 = arith.constant 0 : index
    %c0_42 = arith.constant 0 : index
    %69 = vector.load %arg4[%c2_40, %c0_41, %c0_42] : memref<3x256x512xf32, #tpu.memory_space<vmem>>, vector<1x256x512xf32>
    %70 = vector.shape_cast %69 : vector<1x256x512xf32> to vector<256x512xf32>
    %cst_43 = arith.constant dense<0.000000e+00> : vector<32x512xf32>
    %71 = tpu.matmul %68, %70, %cst_43 {dimension_numbers = #tpu.dot_dimension_numbers<[1], [0], [0], [1], [0, 0, 1, 1], [], []>} : vector<32x256xf32>, vector<256x512xf32>, vector<32x512xf32> -> vector<32x512xf32>
    %72 = arith.addf %67, %71 : vector<32x512xf32>
    %73 = vector.extract_strided_slice %72 {offsets = [0, 0], sizes = [8, 128], strides = [1, 1]} : vector<32x512xf32> to vector<8x128xf32>
    %74 = vector.extract_strided_slice %72 {offsets = [0, 128], sizes = [8, 128], strides = [1, 1]} : vector<32x512xf32> to vector<8x128xf32>
    %75 = arith.maximumf %73, %74 : vector<8x128xf32>
    %76 = vector.extract_strided_slice %72 {offsets = [8, 0], sizes = [8, 128], strides = [1, 1]} : vector<32x512xf32> to vector<8x128xf32>
    %77 = vector.extract_strided_slice %72 {offsets = [8, 128], sizes = [8, 128], strides = [1, 1]} : vector<32x512xf32> to vector<8x128xf32>
    %78 = arith.maximumf %76, %77 : vector<8x128xf32>
    %79 = arith.maximumf %75, %78 : vector<8x128xf32>
    %80 = vector.extract_strided_slice %72 {offsets = [0, 256], sizes = [8, 128], strides = [1, 1]} : vector<32x512xf32> to vector<8x128xf32>
    %81 = vector.extract_strided_slice %72 {offsets = [0, 384], sizes = [8, 128], strides = [1, 1]} : vector<32x512xf32> to vector<8x128xf32>
    %82 = arith.maximumf %80, %81 : vector<8x128xf32>
    %83 = vector.extract_strided_slice %72 {offsets = [8, 256], sizes = [8, 128], strides = [1, 1]} : vector<32x512xf32> to vector<8x128xf32>
    %84 = vector.extract_strided_slice %72 {offsets = [8, 384], sizes = [8, 128], strides = [1, 1]} : vector<32x512xf32> to vector<8x128xf32>
    %85 = arith.maximumf %83, %84 : vector<8x128xf32>
    %86 = arith.maximumf %82, %85 : vector<8x128xf32>
    %87 = vector.extract_strided_slice %72 {offsets = [16, 0], sizes = [8, 128], strides = [1, 1]} : vector<32x512xf32> to vector<8x128xf32>
    %88 = vector.extract_strided_slice %72 {offsets = [16, 128], sizes = [8, 128], strides = [1, 1]} : vector<32x512xf32> to vector<8x128xf32>
    %89 = arith.maximumf %87, %88 : vector<8x128xf32>
    %90 = vector.extract_strided_slice %72 {offsets = [24, 0], sizes = [8, 128], strides = [1, 1]} : vector<32x512xf32> to vector<8x128xf32>
    %91 = vector.extract_strided_slice %72 {offsets = [24, 128], sizes = [8, 128], strides = [1, 1]} : vector<32x512xf32> to vector<8x128xf32>
    %92 = arith.maximumf %90, %91 : vector<8x128xf32>
    %93 = arith.maximumf %89, %92 : vector<8x128xf32>
    %94 = vector.extract_strided_slice %72 {offsets = [16, 256], sizes = [8, 128], strides = [1, 1]} : vector<32x512xf32> to vector<8x128xf32>
    %95 = vector.extract_strided_slice %72 {offsets = [16, 384], sizes = [8, 128], strides = [1, 1]} : vector<32x512xf32> to vector<8x128xf32>
    %96 = arith.maximumf %94, %95 : vector<8x128xf32>
    %97 = vector.extract_strided_slice %72 {offsets = [24, 256], sizes = [8, 128], strides = [1, 1]} : vector<32x512xf32> to vector<8x128xf32>
    %98 = vector.extract_strided_slice %72 {offsets = [24, 384], sizes = [8, 128], strides = [1, 1]} : vector<32x512xf32> to vector<8x128xf32>
    %99 = arith.maximumf %97, %98 : vector<8x128xf32>
    %100 = arith.maximumf %96, %99 : vector<8x128xf32>
    %101 = tpu.concatenate %79, %86, %93, %100 in 1 : vector<8x128xf32>, vector<8x128xf32>, vector<8x128xf32>, vector<8x128xf32> -> vector<8x512xf32>
    %c0_44 = arith.constant 0 : index
    %c0_45 = arith.constant 0 : index
    %102 = vector.load %arg5[%c0_44, %c0_45] : memref<1x512xf32, #tpu.memory_space<vmem>>, vector<1x512xf32>
    %103 = vector.broadcast %102 : vector<1x512xf32> to vector<8x512xf32>
    %104 = arith.addf %101, %103 : vector<8x512xf32>
    %cst_46 = arith.constant 0.000000e+00 : f32
    %105 = vector.broadcast %cst_46 : f32 to vector<8x512xf32>
    %106 = arith.maximumf %104, %105 : vector<8x512xf32>
    %c0_47 = arith.constant 0 : index
    %c0_48 = arith.constant 0 : index
    %107 = vector.load %arg6[%c0_47, %c0_48] : memref<512x128xf32, #tpu.memory_space<vmem>>, vector<512x128xf32>
    %cst_49 = arith.constant dense<0.000000e+00> : vector<8x128xf32>
    %108 = tpu.matmul %106, %107, %cst_49 {dimension_numbers = #tpu.dot_dimension_numbers<[1], [0], [0], [1], [0, 0, 1, 1], [], []>} : vector<8x512xf32>, vector<512x128xf32>, vector<8x128xf32> -> vector<8x128xf32>
    %c0_50 = arith.constant 0 : index
    %c0_51 = arith.constant 0 : index
    %109 = vector.load %arg7[%c0_50, %c0_51] : memref<1x128xf32, #tpu.memory_space<vmem>>, vector<1x128xf32>
    %110 = vector.broadcast %109 : vector<1x128xf32> to vector<8x128xf32>
    %111 = arith.addf %108, %110 : vector<8x128xf32>
    %c0_52 = arith.constant 0 : index
    %c0_53 = arith.constant 0 : index
    %112 = vector.load %arg8[%c0_52, %c0_53] : memref<8x128xf32, #tpu.memory_space<vmem>>, vector<8x128xf32>
    tpu.vector_store %arg8[%c0_52, %c0_53], %111 {strides = array<i32>} : memref<8x128xf32, #tpu.memory_space<vmem>>, vector<8x128xf32>,
    %113 = tpu.iota {dimensions = array<i32: 1>} : vector<8x128xi32>
    %c4_i32 = arith.constant 4 : i32
    %114 = vector.broadcast %c4_i32 : i32 to vector<8x128xi32>
    %115 = arith.cmpi slt, %113, %114 : vector<8x128xi32>
    %cst_54 = arith.constant 0xFF800000 : f32
    %116 = vector.broadcast %cst_54 : f32 to vector<8x128xf32>
    %117 = arith.select %115, %111, %116 : vector<8x128xi1>, vector<8x128xf32>
    %cst_55 = arith.constant dense<0xFF800000> : vector<8xf32>
    %118 = vector.multi_reduction <maximumf>, %117, %cst_55 [1] : vector<8x128xf32> to vector<8xf32>
    %119 = vector.shape_cast %118 : vector<8xf32> to vector<8x1xf32>
    %120 = vector.broadcast %119 : vector<8x1xf32> to vector<8x128xf32>
    %121 = arith.cmpf oeq, %117, %120 : vector<8x128xf32>
    %c128_i32 = arith.constant 128 : i32
    %122 = vector.broadcast %c128_i32 : i32 to vector<8x128xi32>
    %123 = arith.select %121, %113, %122 : vector<8x128xi1>, vector<8x128xi32>
    %cst_56 = arith.constant dense<2147483647> : vector<8xi32>
    %124 = vector.multi_reduction <minsi>, %123, %cst_56 [1] : vector<8x128xi32> to vector<8xi32>
    %125 = vector.shape_cast %124 : vector<8xi32> to vector<8x1xi32>
    %126 = vector.broadcast %125 : vector<8x1xi32> to vector<8x128xi32>
    %127 = arith.cmpi eq, %113, %126 : vector<8x128xi32>
    %128 = arith.extui %127 : vector<8x128xi1> to vector<8x128xi32>
    %129 = arith.sitofp %128 : vector<8x128xi32> to vector<8x128xf32>
    %c0_57 = arith.constant 0 : index
    %c0_58 = arith.constant 0 : index
    %130 = vector.load %arg9[%c0_57, %c0_58] : memref<8x128xf32, #tpu.memory_space<vmem>>, vector<8x128xf32>
    tpu.vector_store %arg9[%c0_57, %c0_58], %129 {strides = array<i32>} : memref<8x128xf32, #tpu.memory_space<vmem>>, vector<8x128xf32>,
    return
  }
  func.func @transform_0(%arg0: i32) -> (i32, i32, i32) {
    %c0_i32 = arith.constant 0 : i32
    %c0_i32_0 = arith.constant 0 : i32
    %c0_i32_1 = arith.constant 0 : i32
    return %arg0, %c0_i32, %c0_i32_0 : i32, i32, i32
  }
  func.func @transform_1(%arg0: i32) -> (i32, i32, i32) {
    %c0_i32 = arith.constant 0 : i32
    %c0_i32_0 = arith.constant 0 : i32
    %c0_i32_1 = arith.constant 0 : i32
    %c0_i32_2 = arith.constant 0 : i32
    return %c0_i32, %c0_i32_0, %c0_i32_1 : i32, i32, i32
  }
  func.func @transform_2(%arg0: i32) -> (i32, i32) {
    %c0_i32 = arith.constant 0 : i32
    %c0_i32_0 = arith.constant 0 : i32
    %c0_i32_1 = arith.constant 0 : i32
    return %c0_i32, %c0_i32_0 : i32, i32
  }
  func.func @transform_3(%arg0: i32) -> (i32, i32, i32) {
    %c0_i32 = arith.constant 0 : i32
    %c0_i32_0 = arith.constant 0 : i32
    %c0_i32_1 = arith.constant 0 : i32
    %c0_i32_2 = arith.constant 0 : i32
    return %c0_i32, %c0_i32_0, %c0_i32_1 : i32, i32, i32
  }
  func.func @transform_4(%arg0: i32) -> (i32, i32) {
    %c0_i32 = arith.constant 0 : i32
    %c0_i32_0 = arith.constant 0 : i32
    %c0_i32_1 = arith.constant 0 : i32
    return %c0_i32, %c0_i32_0 : i32, i32
  }
  func.func @transform_5(%arg0: i32) -> (i32, i32) {
    %c0_i32 = arith.constant 0 : i32
    %c0_i32_0 = arith.constant 0 : i32
    %c0_i32_1 = arith.constant 0 : i32
    return %c0_i32, %c0_i32_0 : i32, i32
  }
  func.func @transform_6(%arg0: i32) -> (i32, i32) {
    %c0_i32 = arith.constant 0 : i32
    %c0_i32_0 = arith.constant 0 : i32
    %c0_i32_1 = arith.constant 0 : i32
    return %c0_i32, %c0_i32_0 : i32, i32
  }
  func.func @transform_7(%arg0: i32) -> (i32, i32) {
    %c0_i32 = arith.constant 0 : i32
    %c0_i32_0 = arith.constant 0 : i32
    return %arg0, %c0_i32 : i32, i32
  }
  func.func @transform_8(%arg0: i32) -> (i32, i32) {
    %c0_i32 = arith.constant 0 : i32
    %c0_i32_0 = arith.constant 0 : i32
    return %arg0, %c0_i32 : i32, i32
  }
}

</mosaic_0001>

<llo_original>
// kernel: tpu_custom_call.1
$region0: #{tpu_custom_call.1}
  #allocation0 [shape = 'u32[]', space=smem, size = 0x4, offset = 0x4, fixed_abs, tag = 'smem constant byte address 0x4 - core index']
  #allocation1 [shape = 'u32[144,128]{1,0:T(1,128)}', space=vmem, size = 0x12000, scoped, tag = 'internal scratch']
  #allocation2 [shape = 'f32[48,256]{1,0:T(8,128)}', space=vmem, size = 0xc000, scoped, tag = 'scratch operand']
  %s0 = inlined_call_operand.vmem [shape: f32[1,96,10], index: 0, kind: input, shape index: {}]
  %s1 = inlined_call_operand.vmem [shape: f32[3,10,512], index: 1, kind: input, shape index: {}]
  %s2 = inlined_call_operand.hbm [shape: f32[1,256], index: 2, kind: input, shape index: {}]
  %s3 = inlined_call_operand.hbm [shape: f32[3,256,512], index: 3, kind: input, shape index: {}]
  %s4 = inlined_call_operand.hbm [shape: f32[1,512], index: 4, kind: input, shape index: {}]
  %s5 = inlined_call_operand.hbm [shape: f32[512,128], index: 5, kind: input, shape index: {}]
  %s6 = inlined_call_operand.hbm [shape: f32[1,128], index: 6, kind: input, shape index: {}]
  %s7 = inlined_call_operand.hbm [shape: f32[8,128], index: 7, kind: output, shape index: {0}]
  %s8 = inlined_call_operand.hbm [shape: f32[8,128], index: 8, kind: output, shape index: {1}]
  %9 = xla_tuple %s7, %s8
  %s10 = sld [smem:[#allocation0]]
  $region66: #{tpu_custom_call.1} parent=0
    _
  %s12 = ssub.s32 1, %s10
  %s13 = scalar_select 0, %s12, %s10
  $region1: #{tpu_custom_call.1} parent=0
    #allocation3 [shape = 'u8[1024]{0}', space=vmem, size = 0x400, scoped, tag = 'input window, operand 2, single buffered']
    #allocation4 [shape = 's32[1]{0}', space=sflag, size = 0x4, scoped, tag = 'scoped memory for tpu_custom_call.1']
    #allocation5 [shape = 's32[1]{0}', space=sflag, size = 0x4, scoped, tag = 'scoped memory for tpu_custom_call.1']
    #allocation6 [shape = 'u8[1572864]{0}', space=vmem, size = 0x180000, scoped, tag = 'input window, operand 3, single buffered']
    #allocation7 [shape = 's32[1]{0}', space=sflag, size = 0x4, scoped, tag = 'scoped memory for tpu_custom_call.1']
    #allocation8 [shape = 'u8[2048]{0}', space=vmem, size = 0x800, scoped, tag = 'input window, operand 4, single buffered']
    #allocation9 [shape = 'u8[262144]{0}', space=vmem, size = 0x40000, scoped, tag = 'input window, operand 5, single buffered']
    #allocation10 [shape = 's32[1]{0}', space=sflag, size = 0x4, scoped, tag = 'scoped memory for tpu_custom_call.1']
    #allocation11 [shape = 'u8[512]{0}', space=vmem, size = 0x400, scoped, tag = 'input window, operand 6, single buffered']
    #allocation12 [shape = 'u8[4096]{0}', space=vmem, size = 0x1000, scoped, tag = 'output window, operand 0, single buffered']
    #allocation13 [shape = 'u8[4096]{0}', space=vmem, size = 0x1000, scoped, tag = 'output window, operand 1, single buffered']
    #allocation14 [shape = 's32[1]{0}', space=sflag, size = 0x4, scoped, tag = 'scoped memory for tpu_custom_call.1']
    %14 = vsyncpa [#allocation4], 0
    %15 = vsyncpa [#allocation7], 0
    %16 = vsyncpa [#allocation10], 0
    %17 = vsyncpa [#allocation5], 0
    %18 = vsyncpa [#allocation14], 0
    // Predicated region
    $region2: #{tpu_custom_call.1} parent=1 // pred_check
      _
    $region3: #{tpu_custom_call.1} parent=1 // pred_check_branch
      %20 = sbr.rel (0) target = $region5
    $region4: #{tpu_custom_call.1} parent=1 // pred_region
      _
    $region5: #{tpu_custom_call.1} parent=1 // pred_fallthru
      _
    // Predicated region
    $region6: #{tpu_custom_call.1} parent=1 // pred_check
      _
    $region7: #{tpu_custom_call.1} parent=1 // pred_check_branch
      %22 = sbr.rel (0) target = $region9
    $region8: #{tpu_custom_call.1} parent=1 // pred_region
      _
    $region9: #{tpu_custom_call.1} parent=1 // pred_fallthru
      _
    // Predicated region
    $region10: #{tpu_custom_call.1} parent=1 // pred_check
      _
    $region11: #{tpu_custom_call.1} parent=1 // pred_check_branch
      %24 = sbr.rel (0) target = $region13
    $region12: #{tpu_custom_call.1} parent=1 // pred_region
      %s26 = ssub.s32 32, 32
      %27 = vsyncadd [#allocation4], %s26
      %s29 = sshll.u32 [#allocation3], 4
      %s30 = int_to_ptr.vmem [resolvable:$true] %s29
      %32 = dma.hbm_to_vmem [thread:$0]  %s2, 32, %s30, [#allocation4]
    $region13: #{tpu_custom_call.1} parent=1 // pred_fallthru
      _
    // Predicated region
    $region14: #{tpu_custom_call.1} parent=1 // pred_check
      _
    $region15: #{tpu_custom_call.1} parent=1 // pred_check_branch
      %34 = sbr.rel (0) target = $region17
    $region16: #{tpu_custom_call.1} parent=1 // pred_region
      %s36 = ssub.s32 49152, 49152
      %37 = vsyncadd [#allocation7], %s36
      %s38 = sshll.u32 [#allocation6], 4
      %s39 = int_to_ptr.vmem [resolvable:$true] %s38
      %44 = dma.hbm_to_vmem [thread:$0]  %s3, 49152, %s39, [#allocation7], 512, 512, 32
    $region17: #{tpu_custom_call.1} parent=1 // pred_fallthru
      _
    // Predicated region
    $region18: #{tpu_custom_call.1} parent=1 // pred_check
      _
    $region19: #{tpu_custom_call.1} parent=1 // pred_check_branch
      %46 = sbr.rel (0) target = $region21
    $region20: #{tpu_custom_call.1} parent=1 // pred_region
      %s48 = ssub.s32 64, 64
      %49 = vsyncadd [#allocation7], %s48
      %s51 = sshll.u32 [#allocation8], 4
      %s52 = int_to_ptr.vmem [resolvable:$true] %s51
      %54 = dma.hbm_to_vmem [thread:$0]  %s4, 64, %s52, [#allocation7]
    $region21: #{tpu_custom_call.1} parent=1 // pred_fallthru
      _
    // Predicated region
    $region22: #{tpu_custom_call.1} parent=1 // pred_check
      _
    $region23: #{tpu_custom_call.1} parent=1 // pred_check_branch
      %56 = sbr.rel (0) target = $region25
    $region24: #{tpu_custom_call.1} parent=1 // pred_region
      %s58 = ssub.s32 8192, 8192
      %59 = vsyncadd [#allocation10], %s58
      %s60 = sshll.u32 [#allocation9], 4
      %s61 = int_to_ptr.vmem [resolvable:$true] %s60
      %66 = dma.hbm_to_vmem [thread:$0]  %s5, 8192, %s61, [#allocation10], 128, 128, 8
    $region25: #{tpu_custom_call.1} parent=1 // pred_fallthru
      _
    // Predicated region
    $region26: #{tpu_custom_call.1} parent=1 // pred_check
      _
    $region27: #{tpu_custom_call.1} parent=1 // pred_check_branch
      %68 = sbr.rel (0) target = $region29
    $region28: #{tpu_custom_call.1} parent=1 // pred_region
      %s70 = ssub.s32 16, 16
      %71 = vsyncadd [#allocation10], %s70
      %s73 = sshll.u32 [#allocation11], 4
      %s74 = int_to_ptr.vmem [resolvable:$true] %s73
      %76 = dma.hbm_to_vmem [thread:$0]  %s6, 16, %s74, [#allocation10]
    $region29: #{tpu_custom_call.1} parent=1 // pred_fallthru
      _
    // Predicated region
    $region30: #{tpu_custom_call.1} parent=1 // pred_check
      _
    $region31: #{tpu_custom_call.1} parent=1 // pred_check_branch
      %78 = sbr.rel (0) target = $region33
    $region32: #{tpu_custom_call.1} parent=1 // pred_region
      %79 = dma.done [#allocation4], 32
    $region33: #{tpu_custom_call.1} parent=1 // pred_fallthru
      _
    // Predicated region
    $region34: #{tpu_custom_call.1} parent=1 // pred_check
      _
    $region35: #{tpu_custom_call.1} parent=1 // pred_check_branch
      %81 = sbr.rel (0) target = $region37
    $region36: #{tpu_custom_call.1} parent=1 // pred_region
      %82 = dma.done [#allocation7], 49152
    $region37: #{tpu_custom_call.1} parent=1 // pred_fallthru
      _
    // Predicated region
    $region38: #{tpu_custom_call.1} parent=1 // pred_check
      _
    $region39: #{tpu_custom_call.1} parent=1 // pred_check_branch
      %84 = sbr.rel (0) target = $region41
    $region40: #{tpu_custom_call.1} parent=1 // pred_region
      %85 = dma.done [#allocation7], 64
    $region41: #{tpu_custom_call.1} parent=1 // pred_fallthru
      _
    // Predicated region
    $region42: #{tpu_custom_call.1} parent=1 // pred_check
      _
    $region43: #{tpu_custom_call.1} parent=1 // pred_check_branch
      %87 = sbr.rel (0) target = $region45
    $region44: #{tpu_custom_call.1} parent=1 // pred_region
      %88 = dma.done [#allocation10], 8192
    $region45: #{tpu_custom_call.1} parent=1 // pred_fallthru
      _
    // Predicated region
    $region46: #{tpu_custom_call.1} parent=1 // pred_check
      _
    $region47: #{tpu_custom_call.1} parent=1 // pred_check_branch
      %90 = sbr.rel (0) target = $region49
    $region48: #{tpu_custom_call.1} parent=1 // pred_region
      %91 = dma.done [#allocation10], 16
    $region49: #{tpu_custom_call.1} parent=1 // pred_fallthru
      _
    %v92 = vld [vmem:[%s0] sm:$0xff]
    %v93 = vld [vmem:[%s0 + $0x8] sm:$0xff]
    %v94 = vld [vmem:[%s0 + $0x10] sm:$0xff]
    %v95 = vld [vmem:[%s0 + $0x18] sm:$0xff]
    %v96 = vld [vmem:[%s0 + $0x20] sm:$0xff]
    %v97 = vld [vmem:[%s0 + $0x28] sm:$0xff]
    %v98 = vld [vmem:[%s0 + $0x30] sm:$0xff]
    %v99 = vld [vmem:[%s0 + $0x38] sm:$0xff]
    %v100 = vld [vmem:[%s0 + $0x40] sm:$0xff]
    %v101 = vld [vmem:[%s0 + $0x48] sm:$0xff]
    %v102 = vld [vmem:[%s0 + $0x50] sm:$0xff]
    %v103 = vld [vmem:[%s0 + $0x58] sm:$0xff]
    %v104 = vld [vmem:[%s1] sm:$0xff]
    %v105 = vld [vmem:[%s1 + $0x8] sm:$0xff]
    %v106 = vld [vmem:[%s1 + $0x10] sm:$0xff]
    %v107 = vld [vmem:[%s1 + $0x18] sm:$0xff]
    %v108 = vld [vmem:[%s1 + $0x20] sm:$0x3]
    %v109 = vld [vmem:[%s1 + $0x28] sm:$0x3]
    %v110 = vld [vmem:[%s1 + $0x30] sm:$0x3]
    %v111 = vld [vmem:[%s1 + $0x38] sm:$0x3]
    %s112 = scalar_lea.vmem %s1, 64
    %v113 = vld [vmem:[%s112] sm:$0xff]
    %v114 = vld [vmem:[%s112 + $0x8] sm:$0xff]
    %v115 = vld [vmem:[%s112 + $0x10] sm:$0xff]
    %v116 = vld [vmem:[%s112 + $0x18] sm:$0xff]
    %v117 = vld [vmem:[%s112 + $0x20] sm:$0x3]
    %v118 = vld [vmem:[%s112 + $0x28] sm:$0x3]
    %v119 = vld [vmem:[%s112 + $0x30] sm:$0x3]
    %v120 = vld [vmem:[%s112 + $0x38] sm:$0x3]
    %vm121 = vcmask 80896
    %v123 = vsel %vm121, %v93, 0
    %v126 = vsel %vm121, %v94, 0
    %v129 = vsel %vm121, %v95, 0
    %v132 = vsel %vm121, %v96, 0
    %v135 = vsel %vm121, %v97, 0
    %v138 = vsel %vm121, %v98, 0
    %v141 = vsel %vm121, %v99, 0
    %v144 = vsel %vm121, %v100, 0
    %v147 = vsel %vm121, %v101, 0
    %v150 = vsel %vm121, %v102, 0
    %vm152 = vcmask 1041408
    %v154 = vsel %vm152, %v117, 0
    %v157 = vsel %vm152, %v118, 0
    %v160 = vsel %vm152, %v119, 0
    %v163 = vsel %vm152, %v120, 0
    %165 = vmatprep.subr.mxu0 %v114
    %166 = vmatpush1.msra.mxu0 %v113
    %167 = vmatprep.subr.mxu0 %v157
    %168 = vmatpush1.msra.mxu0 %v154
    %169 = vmatprep.subr.mxu0 0.0
    %170 = vmatpush1.msra.mxu0 0.0
    %171 = vmatprep.subr.mxu0 0.0
    %172 = vmatpush1.msra.mxu0 0.0
    %173 = vmatprep.subr.mxu0 0.0
    %174 = vmatpush1.msra.mxu0 0.0
    %175 = vmatprep.subr.mxu0 0.0
    %176 = vmatpush1.msra.mxu0 0.0
    %177 = vmatprep.subr.mxu0 0.0
    %178 = vmatpush1.msra.mxu0 0.0
    %179 = vmatprep.subr.mxu0 0.0
    %180 = vmatpush1.msra.mxu0 0.0
    %181 = vmatprep.subr.mxu0 0.0
    %182 = vmatpush1.msra.mxu0 0.0
    %183 = vmatprep.subr.mxu0 0.0
    %184 = vmatpush1.msra.mxu0 0.0
    %185 = vmatprep.subr.mxu0 0.0
    %186 = vmatpush1.msra.mxu0 0.0
    %187 = vmatprep.subr.mxu0 0.0
    %188 = vmatpush1.msra.mxu0 0.0
    %189 = vmatprep.subr.mxu0 0.0
    %190 = vmatpush1.msra.mxu0 0.0
    %191 = vmatprep.subr.mxu0 0.0
    %192 = vmatpush1.msra.mxu0 0.0
    %193 = vmatprep.subr.mxu0 0.0
    %194 = vmatpush1.msra.mxu0 0.0
    %195 = vmatprep.subr.mxu0 0.0
    %196 = vmatpush1.msra.mxu0 0.0
    %197 = vmatprep.subr.mxu0 0.0
    %198 = vmatpush1.msra.mxu0 0.0
    %199 = vmatprep.subr.mxu0 0.0
    %200 = vmatpush1.msra.mxu0 0.0
    %201 = vmatprep.subr.mxu0 0.0
    %202 = vmatpush1.msra.mxu0 0.0
    %203 = vmatprep.subr.mxu0 0.0
    %204 = vmatpush1.msra.mxu0 0.0
    %205 = vmatprep.subr.mxu0 0.0
    %206 = vmatpush1.msra.mxu0 0.0
    %207 = vmatprep.subr.mxu0 0.0
    %208 = vmatpush1.msra.mxu0 0.0
    %209 = vmatprep.subr.mxu0 0.0
    %210 = vmatpush1.msra.mxu0 0.0
    %211 = vmatprep.subr.mxu0 0.0
    %212 = vmatpush1.msra.mxu0 0.0
    %213 = vmatprep.subr.mxu0 0.0
    %214 = vmatpush1.msra.mxu0 0.0
    %215 = vmatprep.subr.mxu0 0.0
    %216 = vmatpush1.msra.mxu0 0.0
    %217 = vmatprep.subr.mxu0 0.0
    %218 = vmatpush1.msra.mxu0 0.0
    %219 = vmatprep.subr.mxu0 0.0
    %220 = vmatpush1.msra.mxu0 0.0
    %221 = vmatprep.subr.mxu0 0.0
    %222 = vmatpush1.msra.mxu0 0.0
    %223 = vmatprep.subr.mxu0 0.0
    %224 = vmatpush1.msra.mxu0 0.0
    %225 = vmatprep.subr.mxu0 0.0
    %226 = vmatpush1.msra.mxu0 0.0
    %227 = vmatprep.subr.mxu0 0.0
    %228 = vmatpush1.msra.mxu0 0.0
    %229 = vmatprep.mubr.f32.mxu0 0.0
    %230 = vmatmul.mubr.f32.gmra.mrb[0].mxu0 %v123
    %v231 = vpop.f32.mrb[0].mxu0
    %v232 = vadd.f32 0.0, %v231
    %v233 = vpop.f32.mrb[0].mxu0
    %v234 = vadd.f32 0.0, %v233
    %235 = vmatprep.mubr.f32.mxu0 0.0
    %236 = vmatmul.mubr.f32.gmra.mrb[0].mxu0 %v126
    %v237 = vpop.f32.mrb[0].mxu0
    %v238 = vadd.f32 0.0, %v237
    %v239 = vpop.f32.mrb[0].mxu0
    %v240 = vadd.f32 0.0, %v239
    %241 = vmatprep.mubr.f32.mxu0 0.0
    %242 = vmatmul.mubr.f32.gmra.mrb[0].mxu0 %v129
    %v243 = vpop.f32.mrb[0].mxu0
    %v244 = vadd.f32 0.0, %v243
    %v245 = vpop.f32.mrb[0].mxu0
    %v246 = vadd.f32 0.0, %v245
    %247 = vmatprep.mubr.f32.mxu0 0.0
    %248 = vmatmul.mubr.f32.gmra.mrb[0].mxu0 %v132
    %v249 = vpop.f32.mrb[0].mxu0
    %v250 = vadd.f32 0.0, %v249
    %v251 = vpop.f32.mrb[0].mxu0
    %v252 = vadd.f32 0.0, %v251
    %253 = vmatprep.mubr.f32.mxu0 0.0
    %254 = vmatmul.mubr.f32.gmra.mrb[0].mxu0 %v135
    %v255 = vpop.f32.mrb[0].mxu0
    %v256 = vadd.f32 0.0, %v255
    %v257 = vpop.f32.mrb[0].mxu0
    %v258 = vadd.f32 0.0, %v257
    %259 = vmatprep.mubr.f32.mxu0 0.0
    %260 = vmatmul.mubr.f32.gmra.mrb[0].mxu0 %v138
    %v261 = vpop.f32.mrb[0].mxu0
    %v262 = vadd.f32 0.0, %v261
    %v263 = vpop.f32.mrb[0].mxu0
    %v264 = vadd.f32 0.0, %v263
    %265 = vmatprep.mubr.f32.mxu0 0.0
    %266 = vmatmul.mubr.f32.gmra.mrb[0].mxu0 %v141
    %v267 = vpop.f32.mrb[0].mxu0
    %v268 = vadd.f32 0.0, %v267
    %v269 = vpop.f32.mrb[0].mxu0
    %v270 = vadd.f32 0.0, %v269
    %271 = vmatprep.mubr.f32.mxu0 0.0
    %272 = vmatmul.mubr.f32.gmra.mrb[0].mxu0 %v144
    %v273 = vpop.f32.mrb[0].mxu0
    %v274 = vadd.f32 0.0, %v273
    %v275 = vpop.f32.mrb[0].mxu0
    %v276 = vadd.f32 0.0, %v275
    %277 = vmatprep.mubr.f32.mxu0 0.0
    %278 = vmatmul.mubr.f32.gmra.mrb[0].mxu0 %v147
    %v279 = vpop.f32.mrb[0].mxu0
    %v280 = vadd.f32 0.0, %v279
    %v281 = vpop.f32.mrb[0].mxu0
    %v282 = vadd.f32 0.0, %v281
    %283 = vmatprep.mubr.f32.mxu0 0.0
    %284 = vmatmul.mubr.f32.gmra.mrb[0].mxu0 %v150
    %v285 = vpop.f32.mrb[0].mxu0
    %v286 = vadd.f32 0.0, %v285
    %v287 = vpop.f32.mrb[0].mxu0
    %v288 = vadd.f32 0.0, %v287
    %289 = vdwg.mxu0
    %290 = vmatprep.subr.mxu0 %v116
    %291 = vmatpush1.msra.mxu0 %v115
    %292 = vmatprep.subr.mxu0 %v163
    %293 = vmatpush1.msra.mxu0 %v160
    %294 = vmatprep.subr.mxu0 0.0
    %295 = vmatpush1.msra.mxu0 0.0
    %296 = vmatprep.subr.mxu0 0.0
    %297 = vmatpush1.msra.mxu0 0.0
    %298 = vmatprep.subr.mxu0 0.0
    %299 = vmatpush1.msra.mxu0 0.0
    %300 = vmatprep.subr.mxu0 0.0
    %301 = vmatpush1.msra.mxu0 0.0
    %302 = vmatprep.subr.mxu0 0.0
    %303 = vmatpush1.msra.mxu0 0.0
    %304 = vmatprep.subr.mxu0 0.0
    %305 = vmatpush1.msra.mxu0 0.0
    %306 = vmatprep.subr.mxu0 0.0
    %307 = vmatpush1.msra.mxu0 0.0
    %308 = vmatprep.subr.mxu0 0.0
    %309 = vmatpush1.msra.mxu0 0.0
    %310 = vmatprep.subr.mxu0 0.0
    %311 = vmatpush1.msra.mxu0 0.0
    %312 = vmatprep.subr.mxu0 0.0
    %313 = vmatpush1.msra.mxu0 0.0
    %314 = vmatprep.subr.mxu0 0.0
    %315 = vmatpush1.msra.mxu0 0.0
    %316 = vmatprep.subr.mxu0 0.0
    %317 = vmatpush1.msra.mxu0 0.0
    %318 = vmatprep.subr.mxu0 0.0
    %319 = vmatpush1.msra.mxu0 0.0
    %320 = vmatprep.subr.mxu0 0.0
    %321 = vmatpush1.msra.mxu0 0.0
    %322 = vmatprep.subr.mxu0 0.0
    %323 = vmatpush1.msra.mxu0 0.0
    %324 = vmatprep.subr.mxu0 0.0
    %325 = vmatpush1.msra.mxu0 0.0
    %326 = vmatprep.subr.mxu0 0.0
    %327 = vmatpush1.msra.mxu0 0.0
    %328 = vmatprep.subr.mxu0 0.0
    %329 = vmatpush1.msra.mxu0 0.0
    %330 = vmatprep.subr.mxu0 0.0
    %331 = vmatpush1.msra.mxu0 0.0
    %332 = vmatprep.subr.mxu0 0.0
    %333 = vmatpush1.msra.mxu0 0.0
    %334 = vmatprep.subr.mxu0 0.0
    %335 = vmatpush1.msra.mxu0 0.0
    %336 = vmatprep.subr.mxu0 0.0
    %337 = vmatpush1.msra.mxu0 0.0
    %338 = vmatprep.subr.mxu0 0.0
    %339 = vmatpush1.msra.mxu0 0.0
    %340 = vmatprep.subr.mxu0 0.0
    %341 = vmatpush1.msra.mxu0 0.0
    %342 = vmatprep.subr.mxu0 0.0
    %343 = vmatpush1.msra.mxu0 0.0
    %344 = vmatprep.subr.mxu0 0.0
    %345 = vmatpush1.msra.mxu0 0.0
    %346 = vmatprep.subr.mxu0 0.0
    %347 = vmatpush1.msra.mxu0 0.0
    %348 = vmatprep.subr.mxu0 0.0
    %349 = vmatpush1.msra.mxu0 0.0
    %350 = vmatprep.subr.mxu0 0.0
    %351 = vmatpush1.msra.mxu0 0.0
    %352 = vmatprep.subr.mxu0 0.0
    %353 = vmatpush1.msra.mxu0 0.0
    %354 = vmatprep.mubr.f32.mxu0 0.0
    %355 = vmatmul.mubr.f32.gmra.mrb[0].mxu0 %v123
    %v356 = vpop.f32.mrb[0].mxu0
    %v357 = vadd.f32 0.0, %v356
    %v358 = vpop.f32.mrb[0].mxu0
    %v359 = vadd.f32 0.0, %v358
    %360 = vmatprep.mubr.f32.mxu0 0.0
    %361 = vmatmul.mubr.f32.gmra.mrb[0].mxu0 %v126
    %v362 = vpop.f32.mrb[0].mxu0
    %v363 = vadd.f32 0.0, %v362
    %v364 = vpop.f32.mrb[0].mxu0
    %v365 = vadd.f32 0.0, %v364
    %366 = vmatprep.mubr.f32.mxu0 0.0
    %367 = vmatmul.mubr.f32.gmra.mrb[0].mxu0 %v129
    %v368 = vpop.f32.mrb[0].mxu0
    %v369 = vadd.f32 0.0, %v368
    %v370 = vpop.f32.mrb[0].mxu0
    %v371 = vadd.f32 0.0, %v370
    %372 = vmatprep.mubr.f32.mxu0 0.0
    %373 = vmatmul.mubr.f32.gmra.mrb[0].mxu0 %v132
    %v374 = vpop.f32.mrb[0].mxu0
    %v375 = vadd.f32 0.0, %v374
    %v376 = vpop.f32.mrb[0].mxu0
    %v377 = vadd.f32 0.0, %v376
    %378 = vmatprep.mubr.f32.mxu0 0.0
    %379 = vmatmul.mubr.f32.gmra.mrb[0].mxu0 %v135
    %v380 = vpop.f32.mrb[0].mxu0
    %v381 = vadd.f32 0.0, %v380
    %v382 = vpop.f32.mrb[0].mxu0
    %v383 = vadd.f32 0.0, %v382
    %384 = vmatprep.mubr.f32.mxu0 0.0
    %385 = vmatmul.mubr.f32.gmra.mrb[0].mxu0 %v138
    %v386 = vpop.f32.mrb[0].mxu0
    %v387 = vadd.f32 0.0, %v386
    %v388 = vpop.f32.mrb[0].mxu0
    %v389 = vadd.f32 0.0, %v388
    %390 = vmatprep.mubr.f32.mxu0 0.0
    %391 = vmatmul.mubr.f32.gmra.mrb[0].mxu0 %v141
    %v392 = vpop.f32.mrb[0].mxu0
    %v393 = vadd.f32 0.0, %v392
    %v394 = vpop.f32.mrb[0].mxu0
    %v395 = vadd.f32 0.0, %v394
    %396 = vmatprep.mubr.f32.mxu0 0.0
    %397 = vmatmul.mubr.f32.gmra.mrb[0].mxu0 %v144
    %v398 = vpop.f32.mrb[0].mxu0
    %v399 = vadd.f32 0.0, %v398
    %v400 = vpop.f32.mrb[0].mxu0
    %v401 = vadd.f32 0.0, %v400
    %402 = vmatprep.mubr.f32.mxu0 0.0
    %403 = vmatmul.mubr.f32.gmra.mrb[0].mxu0 %v147
    %v404 = vpop.f32.mrb[0].mxu0
    %v405 = vadd.f32 0.0, %v404
    %v406 = vpop.f32.mrb[0].mxu0
    %v407 = vadd.f32 0.0, %v406
    %408 = vmatprep.mubr.f32.mxu0 0.0
    %409 = vmatmul.mubr.f32.gmra.mrb[0].mxu0 %v150
    %v410 = vpop.f32.mrb[0].mxu0
    %v411 = vadd.f32 0.0, %v410
    %v412 = vpop.f32.mrb[0].mxu0
    %v413 = vadd.f32 0.0, %v412
    %414 = vdwg.mxu0
    %v416 = vsel %vm121, %v92, 0
    %v419 = vsel %vm152, %v108, 0
    %v422 = vsel %vm152, %v109, 0
    %v425 = vsel %vm152, %v110, 0
    %v428 = vsel %vm152, %v111, 0
    %430 = vmatprep.subr.mxu0 %v105
    %431 = vmatpush1.msra.mxu0 %v104
    %432 = vmatprep.subr.mxu0 %v422
    %433 = vmatpush1.msra.mxu0 %v419
    %434 = vmatprep.subr.mxu0 0.0
    %435 = vmatpush1.msra.mxu0 0.0
    %436 = vmatprep.subr.mxu0 0.0
    %437 = vmatpush1.msra.mxu0 0.0
    %438 = vmatprep.subr.mxu0 0.0
    %439 = vmatpush1.msra.mxu0 0.0
    %440 = vmatprep.subr.mxu0 0.0
    %441 = vmatpush1.msra.mxu0 0.0
    %442 = vmatprep.subr.mxu0 0.0
    %443 = vmatpush1.msra.mxu0 0.0
    %444 = vmatprep.subr.mxu0 0.0
    %445 = vmatpush1.msra.mxu0 0.0
    %446 = vmatprep.subr.mxu0 0.0
    %447 = vmatpush1.msra.mxu0 0.0
    %448 = vmatprep.subr.mxu0 0.0
    %449 = vmatpush1.msra.mxu0 0.0
    %450 = vmatprep.subr.mxu0 0.0
    %451 = vmatpush1.msra.mxu0 0.0
    %452 = vmatprep.subr.mxu0 0.0
    %453 = vmatpush1.msra.mxu0 0.0
    %454 = vmatprep.subr.mxu0 0.0
    %455 = vmatpush1.msra.mxu0 0.0
    %456 = vmatprep.subr.mxu0 0.0
    %457 = vmatpush1.msra.mxu0 0.0
    %458 = vmatprep.subr.mxu0 0.0
    %459 = vmatpush1.msra.mxu0 0.0
    %460 = vmatprep.subr.mxu0 0.0
    %461 = vmatpush1.msra.mxu0 0.0
    %462 = vmatprep.subr.mxu0 0.0
    %463 = vmatpush1.msra.mxu0 0.0
    %464 = vmatprep.subr.mxu0 0.0
    %465 = vmatpush1.msra.mxu0 0.0
    %466 = vmatprep.subr.mxu0 0.0
    %467 = vmatpush1.msra.mxu0 0.0
    %468 = vmatprep.subr.mxu0 0.0
    %469 = vmatpush1.msra.mxu0 0.0
    %470 = vmatprep.subr.mxu0 0.0
    %471 = vmatpush1.msra.mxu0 0.0
    %472 = vmatprep.subr.mxu0 0.0
    %473 = vmatpush1.msra.mxu0 0.0
    %474 = vmatprep.subr.mxu0 0.0
    %475 = vmatpush1.msra.mxu0 0.0
    %476 = vmatprep.subr.mxu0 0.0
    %477 = vmatpush1.msra.mxu0 0.0
    %478 = vmatprep.subr.mxu0 0.0
    %479 = vmatpush1.msra.mxu0 0.0
    %480 = vmatprep.subr.mxu0 0.0
    %481 = vmatpush1.msra.mxu0 0.0
    %482 = vmatprep.subr.mxu0 0.0
    %483 = vmatpush1.msra.mxu0 0.0
    %484 = vmatprep.subr.mxu0 0.0
    %485 = vmatpush1.msra.mxu0 0.0
    %486 = vmatprep.subr.mxu0 0.0
    %487 = vmatpush1.msra.mxu0 0.0
    %488 = vmatprep.subr.mxu0 0.0
    %489 = vmatpush1.msra.mxu0 0.0
    %490 = vmatprep.subr.mxu0 0.0
    %491 = vmatpush1.msra.mxu0 0.0
    %492 = vmatprep.subr.mxu0 0.0
    %493 = vmatpush1.msra.mxu0 0.0
    %494 = vmatprep.mubr.f32.mxu0 0.0
    %495 = vmatmul.mubr.f32.gmra.mrb[0].mxu0 %v416
    %v496 = vpop.f32.mrb[0].mxu0
    %v497 = vadd.f32 %v232, %v496
    %v498 = vpop.f32.mrb[0].mxu0
    %v499 = vadd.f32 %v234, %v498
    %500 = vmatprep.mubr.f32.mxu0 0.0
    %501 = vmatmul.mubr.f32.gmra.mrb[0].mxu0 %v123
    %v502 = vpop.f32.mrb[0].mxu0
    %v503 = vadd.f32 %v238, %v502
    %v504 = vpop.f32.mrb[0].mxu0
    %v505 = vadd.f32 %v240, %v504
    %506 = vmatprep.mubr.f32.mxu0 0.0
    %507 = vmatmul.mubr.f32.gmra.mrb[0].mxu0 %v126
    %v508 = vpop.f32.mrb[0].mxu0
    %v509 = vadd.f32 %v244, %v508
    %v510 = vpop.f32.mrb[0].mxu0
    %v511 = vadd.f32 %v246, %v510
    %512 = vmatprep.mubr.f32.mxu0 0.0
    %513 = vmatmul.mubr.f32.gmra.mrb[0].mxu0 %v129
    %v514 = vpop.f32.mrb[0].mxu0
    %v515 = vadd.f32 %v250, %v514
    %v516 = vpop.f32.mrb[0].mxu0
    %v517 = vadd.f32 %v252, %v516
    %518 = vmatprep.mubr.f32.mxu0 0.0
    %519 = vmatmul.mubr.f32.gmra.mrb[0].mxu0 %v132
    %v520 = vpop.f32.mrb[0].mxu0
    %v521 = vadd.f32 %v256, %v520
    %v522 = vpop.f32.mrb[0].mxu0
    %v523 = vadd.f32 %v258, %v522
    %524 = vmatprep.mubr.f32.mxu0 0.0
    %525 = vmatmul.mubr.f32.gmra.mrb[0].mxu0 %v135
    %v526 = vpop.f32.mrb[0].mxu0
    %v527 = vadd.f32 %v262, %v526
    %v528 = vpop.f32.mrb[0].mxu0
    %v529 = vadd.f32 %v264, %v528
    %530 = vmatprep.mubr.f32.mxu0 0.0
    %531 = vmatmul.mubr.f32.gmra.mrb[0].mxu0 %v138
    %v532 = vpop.f32.mrb[0].mxu0
    %v533 = vadd.f32 %v268, %v532
    %v534 = vpop.f32.mrb[0].mxu0
    %v535 = vadd.f32 %v270, %v534
    %536 = vmatprep.mubr.f32.mxu0 0.0
    %537 = vmatmul.mubr.f32.gmra.mrb[0].mxu0 %v141
    %v538 = vpop.f32.mrb[0].mxu0
    %v539 = vadd.f32 %v274, %v538
    %v540 = vpop.f32.mrb[0].mxu0
    %v541 = vadd.f32 %v276, %v540
    %542 = vmatprep.mubr.f32.mxu0 0.0
    %543 = vmatmul.mubr.f32.gmra.mrb[0].mxu0 %v144
    %v544 = vpop.f32.mrb[0].mxu0
    %v545 = vadd.f32 %v280, %v544
    %v546 = vpop.f32.mrb[0].mxu0
    %v547 = vadd.f32 %v282, %v546
    %548 = vmatprep.mubr.f32.mxu0 0.0
    %549 = vmatmul.mubr.f32.gmra.mrb[0].mxu0 %v147
    %v550 = vpop.f32.mrb[0].mxu0
    %v551 = vadd.f32 %v286, %v550
    %v552 = vpop.f32.mrb[0].mxu0
    %v553 = vadd.f32 %v288, %v552
    %554 = vdwg.mxu0
    %555 = vmatprep.subr.mxu0 %v107
    %556 = vmatpush1.msra.mxu0 %v106
    %557 = vmatprep.subr.mxu0 %v428
    %558 = vmatpush1.msra.mxu0 %v425
    %559 = vmatprep.subr.mxu0 0.0
    %560 = vmatpush1.msra.mxu0 0.0
    %561 = vmatprep.subr.mxu0 0.0
    %562 = vmatpush1.msra.mxu0 0.0
    %563 = vmatprep.subr.mxu0 0.0
    %564 = vmatpush1.msra.mxu0 0.0
    %565 = vmatprep.subr.mxu0 0.0
    %566 = vmatpush1.msra.mxu0 0.0
    %567 = vmatprep.subr.mxu0 0.0
    %568 = vmatpush1.msra.mxu0 0.0
    %569 = vmatprep.subr.mxu0 0.0
    %570 = vmatpush1.msra.mxu0 0.0
    %571 = vmatprep.subr.mxu0 0.0
    %572 = vmatpush1.msra.mxu0 0.0
    %573 = vmatprep.subr.mxu0 0.0
    %574 = vmatpush1.msra.mxu0 0.0
    %575 = vmatprep.subr.mxu0 0.0
    %576 = vmatpush1.msra.mxu0 0.0
    %577 = vmatprep.subr.mxu0 0.0
    %578 = vmatpush1.msra.mxu0 0.0
    %579 = vmatprep.subr.mxu0 0.0
    %580 = vmatpush1.msra.mxu0 0.0
    %581 = vmatprep.subr.mxu0 0.0
    %582 = vmatpush1.msra.mxu0 0.0
    %583 = vmatprep.subr.mxu0 0.0
    %584 = vmatpush1.msra.mxu0 0.0
    %585 = vmatprep.subr.mxu0 0.0
    %586 = vmatpush1.msra.mxu0 0.0
    %587 = vmatprep.subr.mxu0 0.0
    %588 = vmatpush1.msra.mxu0 0.0
    %589 = vmatprep.subr.mxu0 0.0
    %590 = vmatpush1.msra.mxu0 0.0
    %591 = vmatprep.subr.mxu0 0.0
    %592 = vmatpush1.msra.mxu0 0.0
    %593 = vmatprep.subr.mxu0 0.0
    %594 = vmatpush1.msra.mxu0 0.0
    %595 = vmatprep.subr.mxu0 0.0
    %596 = vmatpush1.msra.mxu0 0.0
    %597 = vmatprep.subr.mxu0 0.0
    %598 = vmatpush1.msra.mxu0 0.0
    %599 = vmatprep.subr.mxu0 0.0
    %600 = vmatpush1.msra.mxu0 0.0
    %601 = vmatprep.subr.mxu0 0.0
    %602 = vmatpush1.msra.mxu0 0.0
    %603 = vmatprep.subr.mxu0 0.0
    %604 = vmatpush1.msra.mxu0 0.0
    %605 = vmatprep.subr.mxu0 0.0
    %606 = vmatpush1.msra.mxu0 0.0
    %607 = vmatprep.subr.mxu0 0.0
    %608 = vmatpush1.msra.mxu0 0.0
    %609 = vmatprep.subr.mxu0 0.0
    %610 = vmatpush1.msra.mxu0 0.0
    %611 = vmatprep.subr.mxu0 0.0
    %612 = vmatpush1.msra.mxu0 0.0
    %613 = vmatprep.subr.mxu0 0.0
    %614 = vmatpush1.msra.mxu0 0.0
    %615 = vmatprep.subr.mxu0 0.0
    %616 = vmatpush1.msra.mxu0 0.0
    %617 = vmatprep.subr.mxu0 0.0
    %618 = vmatpush1.msra.mxu0 0.0
    %619 = vmatprep.mubr.f32.mxu0 0.0
    %620 = vmatmul.mubr.f32.gmra.mrb[0].mxu0 %v416
    %v621 = vpop.f32.mrb[0].mxu0
    %v622 = vadd.f32 %v357, %v621
    %v623 = vpop.f32.mrb[0].mxu0
    %v624 = vadd.f32 %v359, %v623
    %625 = vmatprep.mubr.f32.mxu0 0.0
    %626 = vmatmul.mubr.f32.gmra.mrb[0].mxu0 %v123
    %v627 = vpop.f32.mrb[0].mxu0
    %v628 = vadd.f32 %v363, %v627
    %v629 = vpop.f32.mrb[0].mxu0
    %v630 = vadd.f32 %v365, %v629
    %631 = vmatprep.mubr.f32.mxu0 0.0
    %632 = vmatmul.mubr.f32.gmra.mrb[0].mxu0 %v126
    %v633 = vpop.f32.mrb[0].mxu0
    %v634 = vadd.f32 %v369, %v633
    %v635 = vpop.f32.mrb[0].mxu0
    %v636 = vadd.f32 %v371, %v635
    %637 = vmatprep.mubr.f32.mxu0 0.0
    %638 = vmatmul.mubr.f32.gmra.mrb[0].mxu0 %v129
    %v639 = vpop.f32.mrb[0].mxu0
    %v640 = vadd.f32 %v375, %v639
    %v641 = vpop.f32.mrb[0].mxu0
    %v642 = vadd.f32 %v377, %v641
    %643 = vmatprep.mubr.f32.mxu0 0.0
    %644 = vmatmul.mubr.f32.gmra.mrb[0].mxu0 %v132
    %v645 = vpop.f32.mrb[0].mxu0
    %v646 = vadd.f32 %v381, %v645
    %v647 = vpop.f32.mrb[0].mxu0
    %v648 = vadd.f32 %v383, %v647
    %649 = vmatprep.mubr.f32.mxu0 0.0
    %650 = vmatmul.mubr.f32.gmra.mrb[0].mxu0 %v135
    %v651 = vpop.f32.mrb[0].mxu0
    %v652 = vadd.f32 %v387, %v651
    %v653 = vpop.f32.mrb[0].mxu0
    %v654 = vadd.f32 %v389, %v653
    %655 = vmatprep.mubr.f32.mxu0 0.0
    %656 = vmatmul.mubr.f32.gmra.mrb[0].mxu0 %v138
    %v657 = vpop.f32.mrb[0].mxu0
    %v658 = vadd.f32 %v393, %v657
    %v659 = vpop.f32.mrb[0].mxu0
    %v660 = vadd.f32 %v395, %v659
    %661 = vmatprep.mubr.f32.mxu0 0.0
    %662 = vmatmul.mubr.f32.gmra.mrb[0].mxu0 %v141
    %v663 = vpop.f32.mrb[0].mxu0
    %v664 = vadd.f32 %v399, %v663
    %v665 = vpop.f32.mrb[0].mxu0
    %v666 = vadd.f32 %v401, %v665
    %667 = vmatprep.mubr.f32.mxu0 0.0
    %668 = vmatmul.mubr.f32.gmra.mrb[0].mxu0 %v144
    %v669 = vpop.f32.mrb[0].mxu0
    %v670 = vadd.f32 %v405, %v669
    %v671 = vpop.f32.mrb[0].mxu0
    %v672 = vadd.f32 %v407, %v671
    %673 = vmatprep.mubr.f32.mxu0 0.0
    %674 = vmatmul.mubr.f32.gmra.mrb[0].mxu0 %v147
    %v675 = vpop.f32.mrb[0].mxu0
    %v676 = vadd.f32 %v411, %v675
    %v677 = vpop.f32.mrb[0].mxu0
    %v678 = vadd.f32 %v413, %v677
    %679 = vdwg.mxu0
    %s680 = scalar_lea.vmem %s1, 128
    %v681 = vld [vmem:[%s680] sm:$0xff]
    %v682 = vld [vmem:[%s680 + $0x8] sm:$0xff]
    %v683 = vld [vmem:[%s680 + $0x10] sm:$0xff]
    %v684 = vld [vmem:[%s680 + $0x18] sm:$0xff]
    %v685 = vld [vmem:[%s680 + $0x20] sm:$0x3]
    %v686 = vld [vmem:[%s680 + $0x28] sm:$0x3]
    %v687 = vld [vmem:[%s680 + $0x30] sm:$0x3]
    %v688 = vld [vmem:[%s680 + $0x38] sm:$0x3]
    %v690 = vsel %vm121, %v103, 0
    %v693 = vsel %vm152, %v685, 0
    %v696 = vsel %vm152, %v686, 0
    %v699 = vsel %vm152, %v687, 0
    %v702 = vsel %vm152, %v688, 0
    %704 = vmatprep.subr.mxu0 %v682
    %705 = vmatpush1.msra.mxu0 %v681
    %706 = vmatprep.subr.mxu0 %v696
    %707 = vmatpush1.msra.mxu0 %v693
    %708 = vmatprep.subr.mxu0 0.0
    %709 = vmatpush1.msra.mxu0 0.0
    %710 = vmatprep.subr.mxu0 0.0
    %711 = vmatpush1.msra.mxu0 0.0
    %712 = vmatprep.subr.mxu0 0.0
    %713 = vmatpush1.msra.mxu0 0.0
    %714 = vmatprep.subr.mxu0 0.0
    %715 = vmatpush1.msra.mxu0 0.0
    %716 = vmatprep.subr.mxu0 0.0
    %717 = vmatpush1.msra.mxu0 0.0
    %718 = vmatprep.subr.mxu0 0.0
    %719 = vmatpush1.msra.mxu0 0.0
    %720 = vmatprep.subr.mxu0 0.0
    %721 = vmatpush1.msra.mxu0 0.0
    %722 = vmatprep.subr.mxu0 0.0
    %723 = vmatpush1.msra.mxu0 0.0
    %724 = vmatprep.subr.mxu0 0.0
    %725 = vmatpush1.msra.mxu0 0.0
    %726 = vmatprep.subr.mxu0 0.0
    %727 = vmatpush1.msra.mxu0 0.0
    %728 = vmatprep.subr.mxu0 0.0
    %729 = vmatpush1.msra.mxu0 0.0
    %730 = vmatprep.subr.mxu0 0.0
    %731 = vmatpush1.msra.mxu0 0.0
    %732 = vmatprep.subr.mxu0 0.0
    %733 = vmatpush1.msra.mxu0 0.0
    %734 = vmatprep.subr.mxu0 0.0
    %735 = vmatpush1.msra.mxu0 0.0
    %736 = vmatprep.subr.mxu0 0.0
    %737 = vmatpush1.msra.mxu0 0.0
    %738 = vmatprep.subr.mxu0 0.0
    %739 = vmatpush1.msra.mxu0 0.0
    %740 = vmatprep.subr.mxu0 0.0
    %741 = vmatpush1.msra.mxu0 0.0
    %742 = vmatprep.subr.mxu0 0.0
    %743 = vmatpush1.msra.mxu0 0.0
    %744 = vmatprep.subr.mxu0 0.0
    %745 = vmatpush1.msra.mxu0 0.0
    %746 = vmatprep.subr.mxu0 0.0
    %747 = vmatpush1.msra.mxu0 0.0
    %748 = vmatprep.subr.mxu0 0.0
    %749 = vmatpush1.msra.mxu0 0.0
    %750 = vmatprep.subr.mxu0 0.0
    %751 = vmatpush1.msra.mxu0 0.0
    %752 = vmatprep.subr.mxu0 0.0
    %753 = vmatpush1.msra.mxu0 0.0
    %754 = vmatprep.subr.mxu0 0.0
    %755 = vmatpush1.msra.mxu0 0.0
    %756 = vmatprep.subr.mxu0 0.0
    %757 = vmatpush1.msra.mxu0 0.0
    %758 = vmatprep.subr.mxu0 0.0
    %759 = vmatpush1.msra.mxu0 0.0
    %760 = vmatprep.subr.mxu0 0.0
    %761 = vmatpush1.msra.mxu0 0.0
    %762 = vmatprep.subr.mxu0 0.0
    %763 = vmatpush1.msra.mxu0 0.0
    %764 = vmatprep.subr.mxu0 0.0
    %765 = vmatpush1.msra.mxu0 0.0
    %766 = vmatprep.subr.mxu0 0.0
    %767 = vmatpush1.msra.mxu0 0.0
    %768 = vmatprep.mubr.f32.mxu0 0.0
    %769 = vmatmul.mubr.f32.gmra.mrb[0].mxu0 %v126
    %v770 = vpop.f32.mrb[0].mxu0
    %v771 = vadd.f32 0.0, %v770
    %v772 = vpop.f32.mrb[0].mxu0
    %v773 = vadd.f32 0.0, %v772
    %774 = vmatprep.mubr.f32.mxu0 0.0
    %775 = vmatmul.mubr.f32.gmra.mrb[0].mxu0 %v129
    %v776 = vpop.f32.mrb[0].mxu0
    %v777 = vadd.f32 0.0, %v776
    %v778 = vpop.f32.mrb[0].mxu0
    %v779 = vadd.f32 0.0, %v778
    %780 = vmatprep.mubr.f32.mxu0 0.0
    %781 = vmatmul.mubr.f32.gmra.mrb[0].mxu0 %v132
    %v782 = vpop.f32.mrb[0].mxu0
    %v783 = vadd.f32 0.0, %v782
    %v784 = vpop.f32.mrb[0].mxu0
    %v785 = vadd.f32 0.0, %v784
    %786 = vmatprep.mubr.f32.mxu0 0.0
    %787 = vmatmul.mubr.f32.gmra.mrb[0].mxu0 %v135
    %v788 = vpop.f32.mrb[0].mxu0
    %v789 = vadd.f32 0.0, %v788
    %v790 = vpop.f32.mrb[0].mxu0
    %v791 = vadd.f32 0.0, %v790
    %792 = vmatprep.mubr.f32.mxu0 0.0
    %793 = vmatmul.mubr.f32.gmra.mrb[0].mxu0 %v138
    %v794 = vpop.f32.mrb[0].mxu0
    %v795 = vadd.f32 0.0, %v794
    %v796 = vpop.f32.mrb[0].mxu0
    %v797 = vadd.f32 0.0, %v796
    %798 = vmatprep.mubr.f32.mxu0 0.0
    %799 = vmatmul.mubr.f32.gmra.mrb[0].mxu0 %v141
    %v800 = vpop.f32.mrb[0].mxu0
    %v801 = vadd.f32 0.0, %v800
    %v802 = vpop.f32.mrb[0].mxu0
    %v803 = vadd.f32 0.0, %v802
    %804 = vmatprep.mubr.f32.mxu0 0.0
    %805 = vmatmul.mubr.f32.gmra.mrb[0].mxu0 %v144
    %v806 = vpop.f32.mrb[0].mxu0
    %v807 = vadd.f32 0.0, %v806
    %v808 = vpop.f32.mrb[0].mxu0
    %v809 = vadd.f32 0.0, %v808
    %810 = vmatprep.mubr.f32.mxu0 0.0
    %811 = vmatmul.mubr.f32.gmra.mrb[0].mxu0 %v147
    %v812 = vpop.f32.mrb[0].mxu0
    %v813 = vadd.f32 0.0, %v812
    %v814 = vpop.f32.mrb[0].mxu0
    %v815 = vadd.f32 0.0, %v814
    %816 = vmatprep.mubr.f32.mxu0 0.0
    %817 = vmatmul.mubr.f32.gmra.mrb[0].mxu0 %v150
    %v818 = vpop.f32.mrb[0].mxu0
    %v819 = vadd.f32 0.0, %v818
    %v820 = vpop.f32.mrb[0].mxu0
    %v821 = vadd.f32 0.0, %v820
    %822 = vmatprep.mubr.f32.mxu0 0.0
    %823 = vmatmul.mubr.f32.gmra.mrb[0].mxu0 %v690
    %v824 = vpop.f32.mrb[0].mxu0
    %v825 = vadd.f32 0.0, %v824
    %v826 = vpop.f32.mrb[0].mxu0
    %v827 = vadd.f32 0.0, %v826
    %828 = vdwg.mxu0
    %829 = vmatprep.subr.mxu0 %v684
    %830 = vmatpush1.msra.mxu0 %v683
    %831 = vmatprep.subr.mxu0 %v702
    %832 = vmatpush1.msra.mxu0 %v699
    %833 = vmatprep.subr.mxu0 0.0
    %834 = vmatpush1.msra.mxu0 0.0
    %835 = vmatprep.subr.mxu0 0.0
    %836 = vmatpush1.msra.mxu0 0.0
    %837 = vmatprep.subr.mxu0 0.0
    %838 = vmatpush1.msra.mxu0 0.0
    %839 = vmatprep.subr.mxu0 0.0
    %840 = vmatpush1.msra.mxu0 0.0
    %841 = vmatprep.subr.mxu0 0.0
    %842 = vmatpush1.msra.mxu0 0.0
    %843 = vmatprep.subr.mxu0 0.0
    %844 = vmatpush1.msra.mxu0 0.0
    %845 = vmatprep.subr.mxu0 0.0
    %846 = vmatpush1.msra.mxu0 0.0
    %847 = vmatprep.subr.mxu0 0.0
    %848 = vmatpush1.msra.mxu0 0.0
    %849 = vmatprep.subr.mxu0 0.0
    %850 = vmatpush1.msra.mxu0 0.0
    %851 = vmatprep.subr.mxu0 0.0
    %852 = vmatpush1.msra.mxu0 0.0
    %853 = vmatprep.subr.mxu0 0.0
    %854 = vmatpush1.msra.mxu0 0.0
    %855 = vmatprep.subr.mxu0 0.0
    %856 = vmatpush1.msra.mxu0 0.0
    %857 = vmatprep.subr.mxu0 0.0
    %858 = vmatpush1.msra.mxu0 0.0
    %859 = vmatprep.subr.mxu0 0.0
    %860 = vmatpush1.msra.mxu0 0.0
    %861 = vmatprep.subr.mxu0 0.0
    %862 = vmatpush1.msra.mxu0 0.0
    %863 = vmatprep.subr.mxu0 0.0
    %864 = vmatpush1.msra.mxu0 0.0
    %865 = vmatprep.subr.mxu0 0.0
    %866 = vmatpush1.msra.mxu0 0.0
    %867 = vmatprep.subr.mxu0 0.0
    %868 = vmatpush1.msra.mxu0 0.0
    %869 = vmatprep.subr.mxu0 0.0
    %870 = vmatpush1.msra.mxu0 0.0
    %871 = vmatprep.subr.mxu0 0.0
    %872 = vmatpush1.msra.mxu0 0.0
    %873 = vmatprep.subr.mxu0 0.0
    %874 = vmatpush1.msra.mxu0 0.0
    %875 = vmatprep.subr.mxu0 0.0
    %876 = vmatpush1.msra.mxu0 0.0
    %877 = vmatprep.subr.mxu0 0.0
    %878 = vmatpush1.msra.mxu0 0.0
    %879 = vmatprep.subr.mxu0 0.0
    %880 = vmatpush1.msra.mxu0 0.0
    %881 = vmatprep.subr.mxu0 0.0
    %882 = vmatpush1.msra.mxu0 0.0
    %883 = vmatprep.subr.mxu0 0.0
    %884 = vmatpush1.msra.mxu0 0.0
    %885 = vmatprep.subr.mxu0 0.0
    %886 = vmatpush1.msra.mxu0 0.0
    %887 = vmatprep.subr.mxu0 0.0
    %888 = vmatpush1.msra.mxu0 0.0
    %889 = vmatprep.subr.mxu0 0.0
    %890 = vmatpush1.msra.mxu0 0.0
    %891 = vmatprep.subr.mxu0 0.0
    %892 = vmatpush1.msra.mxu0 0.0
    %893 = vmatprep.mubr.f32.mxu0 0.0
    %894 = vmatmul.mubr.f32.gmra.mrb[0].mxu0 %v126
    %v895 = vpop.f32.mrb[0].mxu0
    %v896 = vadd.f32 0.0, %v895
    %v897 = vpop.f32.mrb[0].mxu0
    %v898 = vadd.f32 0.0, %v897
    %899 = vmatprep.mubr.f32.mxu0 0.0
    %900 = vmatmul.mubr.f32.gmra.mrb[0].mxu0 %v129
    %v901 = vpop.f32.mrb[0].mxu0
    %v902 = vadd.f32 0.0, %v901
    %v903 = vpop.f32.mrb[0].mxu0
    %v904 = vadd.f32 0.0, %v903
    %905 = vmatprep.mubr.f32.mxu0 0.0
    %906 = vmatmul.mubr.f32.gmra.mrb[0].mxu0 %v132
    %v907 = vpop.f32.mrb[0].mxu0
    %v908 = vadd.f32 0.0, %v907
    %v909 = vpop.f32.mrb[0].mxu0
    %v910 = vadd.f32 0.0, %v909
    %911 = vmatprep.mubr.f32.mxu0 0.0
    %912 = vmatmul.mubr.f32.gmra.mrb[0].mxu0 %v135
    %v913 = vpop.f32.mrb[0].mxu0
    %v914 = vadd.f32 0.0, %v913
    %v915 = vpop.f32.mrb[0].mxu0
    %v916 = vadd.f32 0.0, %v915
    %917 = vmatprep.mubr.f32.mxu0 0.0
    %918 = vmatmul.mubr.f32.gmra.mrb[0].mxu0 %v138
    %v919 = vpop.f32.mrb[0].mxu0
    %v920 = vadd.f32 0.0, %v919
    %v921 = vpop.f32.mrb[0].mxu0
    %v922 = vadd.f32 0.0, %v921
    %923 = vmatprep.mubr.f32.mxu0 0.0
    %924 = vmatmul.mubr.f32.gmra.mrb[0].mxu0 %v141
    %v925 = vpop.f32.mrb[0].mxu0
    %v926 = vadd.f32 0.0, %v925
    %v927 = vpop.f32.mrb[0].mxu0
    %v928 = vadd.f32 0.0, %v927
    %929 = vmatprep.mubr.f32.mxu0 0.0
    %930 = vmatmul.mubr.f32.gmra.mrb[0].mxu0 %v144
    %v931 = vpop.f32.mrb[0].mxu0
    %v932 = vadd.f32 0.0, %v931
    %v933 = vpop.f32.mrb[0].mxu0
    %v934 = vadd.f32 0.0, %v933
    %935 = vmatprep.mubr.f32.mxu0 0.0
    %936 = vmatmul.mubr.f32.gmra.mrb[0].mxu0 %v147
    %v937 = vpop.f32.mrb[0].mxu0
    %v938 = vadd.f32 0.0, %v937
    %v939 = vpop.f32.mrb[0].mxu0
    %v940 = vadd.f32 0.0, %v939
    %941 = vmatprep.mubr.f32.mxu0 0.0
    %942 = vmatmul.mubr.f32.gmra.mrb[0].mxu0 %v150
    %v943 = vpop.f32.mrb[0].mxu0
    %v944 = vadd.f32 0.0, %v943
    %v945 = vpop.f32.mrb[0].mxu0
    %v946 = vadd.f32 0.0, %v945
    %947 = vmatprep.mubr.f32.mxu0 0.0
    %948 = vmatmul.mubr.f32.gmra.mrb[0].mxu0 %v690
    %v949 = vpop.f32.mrb[0].mxu0
    %v950 = vadd.f32 0.0, %v949
    %v951 = vpop.f32.mrb[0].mxu0
    %v952 = vadd.f32 0.0, %v951
    %953 = vdwg.mxu0
    %v954 = vadd.f32 %v497, %v771
    %v955 = vadd.f32 %v499, %v773
    %v956 = vadd.f32 %v622, %v896
    %v957 = vadd.f32 %v624, %v898
    %v958 = vadd.f32 %v503, %v777
    %v959 = vadd.f32 %v505, %v779
    %v960 = vadd.f32 %v628, %v902
    %v961 = vadd.f32 %v630, %v904
    %v962 = vadd.f32 %v509, %v783
    %v963 = vadd.f32 %v511, %v785
    %v964 = vadd.f32 %v634, %v908
    %v965 = vadd.f32 %v636, %v910
    %v966 = vadd.f32 %v515, %v789
    %v967 = vadd.f32 %v517, %v791
    %v968 = vadd.f32 %v640, %v914
    %v969 = vadd.f32 %v642, %v916
    %v970 = vadd.f32 %v521, %v795
    %v971 = vadd.f32 %v523, %v797
    %v972 = vadd.f32 %v646, %v920
    %v973 = vadd.f32 %v648, %v922
    %v974 = vadd.f32 %v527, %v801
    %v975 = vadd.f32 %v529, %v803
    %v976 = vadd.f32 %v652, %v926
    %v977 = vadd.f32 %v654, %v928
    %v978 = vadd.f32 %v533, %v807
    %v979 = vadd.f32 %v535, %v809
    %v980 = vadd.f32 %v658, %v932
    %v981 = vadd.f32 %v660, %v934
    %v982 = vadd.f32 %v539, %v813
    %v983 = vadd.f32 %v541, %v815
    %v984 = vadd.f32 %v664, %v938
    %v985 = vadd.f32 %v666, %v940
    %v986 = vadd.f32 %v545, %v819
    %v987 = vadd.f32 %v547, %v821
    %v988 = vadd.f32 %v670, %v944
    %v989 = vadd.f32 %v672, %v946
    %v990 = vadd.f32 %v551, %v825
    %v991 = vadd.f32 %v553, %v827
    %v992 = vadd.f32 %v676, %v950
    %v993 = vadd.f32 %v678, %v952
    %v994 = vmax.f32 %v954, %v956
    %v995 = vmax.f32 %v955, %v957
    %v996 = vmax.f32 %v958, %v960
    %v997 = vmax.f32 %v959, %v961
    %v998 = vmax.f32 %v962, %v964
    %v999 = vmax.f32 %v963, %v965
    %v1000 = vmax.f32 %v966, %v968
    %v1001 = vmax.f32 %v967, %v969
    %v1002 = vmax.f32 %v970, %v972
    %v1003 = vmax.f32 %v971, %v973
    %v1004 = vmax.f32 %v974, %v976
    %v1005 = vmax.f32 %v975, %v977
    %v1006 = vmax.f32 %v978, %v980
    %v1007 = vmax.f32 %v979, %v981
    %v1008 = vmax.f32 %v982, %v984
    %v1009 = vmax.f32 %v983, %v985
    %v1010 = vmax.f32 %v986, %v988
    %v1011 = vmax.f32 %v987, %v989
    %v1012 = vmax.f32 %v990, %v992
    %v1013 = vmax.f32 %v991, %v993
    %v1014 = vld [vmem:[#allocation3] sm:$0x3]
    %v1016 = vlaneseq
    %v1017 = vshrl.u32 %v1016, 7
    %v1018 = vsub.s32 0, %v1017
    %v1019 = vrot.slane %v1014, %v1018
    %v1020 = vlaneseq
    %v1021 = vshrl.u32 %v1020, 7
    %v1022 = vsub.s32 1, %v1021
    %v1023 = vrot.slane %v1014, %v1022
    %1026 = vst [vmem:[#allocation2] sm:$0xff] 0.0
    %1027 = vst [vmem:[#allocation2 + $0x8] sm:$0xff] 0.0
    %v1028 = vmax.f32 %v994, %v996
    %v1029 = vmax.f32 %v995, %v997
    %v1030 = vadd.f32 %v1028, %v1019
    %v1031 = vadd.f32 %v1029, %v1023
    %v1032 = vmax.f32 %v1030, 0.0
    %v1033 = vmax.f32 %v1031, 0.0
    %1034 = vst [vmem:[#allocation2 + $0x10] sm:$0xff] %v1032
    %1035 = vst [vmem:[#allocation2 + $0x18] sm:$0xff] %v1033
    %v1036 = vmax.f32 %v998, %v1000
    %v1037 = vmax.f32 %v999, %v1001
    %v1038 = vadd.f32 %v1036, %v1019
    %v1039 = vadd.f32 %v1037, %v1023
    %v1040 = vmax.f32 %v1038, 0.0
    %v1041 = vmax.f32 %v1039, 0.0
    %1042 = vst [vmem:[#allocation2 + $0x20] sm:$0xff] %v1040
    %1043 = vst [vmem:[#allocation2 + $0x28] sm:$0xff] %v1041
    %v1044 = vmax.f32 %v1002, %v1004
    %v1045 = vmax.f32 %v1003, %v1005
    %v1046 = vadd.f32 %v1044, %v1019
    %v1047 = vadd.f32 %v1045, %v1023
    %v1048 = vmax.f32 %v1046, 0.0
    %v1049 = vmax.f32 %v1047, 0.0
    %1050 = vst [vmem:[#allocation2 + $0x30] sm:$0xff] %v1048
    %1051 = vst [vmem:[#allocation2 + $0x38] sm:$0xff] %v1049
    %v1052 = vmax.f32 %v1006, %v1008
    %v1053 = vmax.f32 %v1007, %v1009
    %v1054 = vadd.f32 %v1052, %v1019
    %v1055 = vadd.f32 %v1053, %v1023
    %v1056 = vmax.f32 %v1054, 0.0
    %v1057 = vmax.f32 %v1055, 0.0
    %1058 = vst [vmem:[#allocation2 + $0x40] sm:$0xff] %v1056
    %1059 = vst [vmem:[#allocation2 + $0x48] sm:$0xff] %v1057
    %v1060 = vmax.f32 %v1010, %v1012
    %v1061 = vmax.f32 %v1011, %v1013
    %v1062 = vadd.f32 %v1060, %v1019
    %v1063 = vadd.f32 %v1061, %v1023
    %v1064 = vmax.f32 %v1062, 0.0
    %v1065 = vmax.f32 %v1063, 0.0
    %1066 = vst [vmem:[#allocation2 + $0x50] sm:$0xff] %v1064
    %1067 = vst [vmem:[#allocation2 + $0x58] sm:$0xff] %v1065
    %v1068 = vld [vmem:[#allocation2] sm:$0xff]
    %v1069 = vld [vmem:[#allocation2 + $0x8] sm:$0xff]
    %v1070 = vld [vmem:[#allocation2 + $0x10] sm:$0xff]
    %v1071 = vld [vmem:[#allocation2 + $0x18] sm:$0xff]
    %v1072 = vld [vmem:[#allocation2 + $0x20] sm:$0xff]
    %v1073 = vld [vmem:[#allocation2 + $0x28] sm:$0xff]
    %v1074 = vld [vmem:[#allocation2 + $0x30] sm:$0xff]
    %v1075 = vld [vmem:[#allocation2 + $0x38] sm:$0xff]
    %v1076 = vld [vmem:[#allocation6] sm:$0xff]
    %v1077 = vld [vmem:[#allocation6 + $0x8] sm:$0xff]
    %v1078 = vld [vmem:[#allocation6 + $0x10] sm:$0xff]
    %v1079 = vld [vmem:[#allocation6 + $0x18] sm:$0xff]
    %v1080 = vld [vmem:[#allocation6 + $0x20] sm:$0xff]
    %v1081 = vld [vmem:[#allocation6 + $0x28] sm:$0xff]
    %v1082 = vld [vmem:[#allocation6 + $0x30] sm:$0xff]
    %v1083 = vld [vmem:[#allocation6 + $0x38] sm:$0xff]
    %v1084 = vld [vmem:[#allocation6 + $0x40] sm:$0xff]
    %v1085 = vld [vmem:[#allocation6 + $0x48] sm:$0xff]
    %v1086 = vld [vmem:[#allocation6 + $0x50] sm:$0xff]
    %v1087 = vld [vmem:[#allocation6 + $0x58] sm:$0xff]
    %v1088 = vld [vmem:[#allocation6 + $0x60] sm:$0xff]
    %v1089 = vld [vmem:[#allocation6 + $0x68] sm:$0xff]
    %v1090 = vld [vmem:[#allocation6 + $0x70] sm:$0xff]
    %v1091 = vld [vmem:[#allocation6 + $0x78] sm:$0xff]
    %v1092 = vld [vmem:[#allocation6 + $0x80] sm:$0xff]
    %v1093 = vld [vmem:[#allocation6 + $0x88] sm:$0xff]
    %v1094 = vld [vmem:[#allocation6 + $0x90] sm:$0xff]
    %v1095 = vld [vmem:[#allocation6 + $0x98] sm:$0xff]
    %v1096 = vld [vmem:[#allocation6 + $0xa0] sm:$0xff]
    %v1097 = vld [vmem:[#allocation6 + $0xa8] sm:$0xff]
    %v1098 = vld [vmem:[#allocation6 + $0xb0] sm:$0xff]
    %v1099 = vld [vmem:[#allocation6 + $0xb8] sm:$0xff]
    %v1100 = vld [vmem:[#allocation6 + $0xc0] sm:$0xff]
    %v1101 = vld [vmem:[#allocation6 + $0xc8] sm:$0xff]
    %v1102 = vld [vmem:[#allocation6 + $0xd0] sm:$0xff]
    %v1103 = vld [vmem:[#allocation6 + $0xd8] sm:$0xff]
    %v1104 = vld [vmem:[#allocation6 + $0xe0] sm:$0xff]
    %v1105 = vld [vmem:[#allocation6 + $0xe8] sm:$0xff]
    %v1106 = vld [vmem:[#allocation6 + $0xf0] sm:$0xff]
    %v1107 = vld [vmem:[#allocation6 + $0xf8] sm:$0xff]
    %v1108 = vld [vmem:[#allocation6 + $0x100] sm:$0xff]
    %v1109 = vld [vmem:[#allocation6 + $0x108] sm:$0xff]
    %v1110 = vld [vmem:[#allocation6 + $0x110] sm:$0xff]
    %v1111 = vld [vmem:[#allocation6 + $0x118] sm:$0xff]
    %v1112 = vld [vmem:[#allocation6 + $0x120] sm:$0xff]
    %v1113 = vld [vmem:[#allocation6 + $0x128] sm:$0xff]
    %v1114 = vld [vmem:[#allocation6 + $0x130] sm:$0xff]
    %v1115 = vld [vmem:[#allocation6 + $0x138] sm:$0xff]
    %v1116 = vld [vmem:[#allocation6 + $0x140] sm:$0xff]
    %v1117 = vld [vmem:[#allocation6 + $0x148] sm:$0xff]
    %v1118 = vld [vmem:[#allocation6 + $0x150] sm:$0xff]
    %v1119 = vld [vmem:[#allocation6 + $0x158] sm:$0xff]
    %v1120 = vld [vmem:[#allocation6 + $0x160] sm:$0xff]
    %v1121 = vld [vmem:[#allocation6 + $0x168] sm:$0xff]
    %v1122 = vld [vmem:[#allocation6 + $0x170] sm:$0xff]
    %v1123 = vld [vmem:[#allocation6 + $0x178] sm:$0xff]
    %v1124 = vld [vmem:[#allocation6 + $0x180] sm:$0xff]
    %v1125 = vld [vmem:[#allocation6 + $0x188] sm:$0xff]
    %v1126 = vld [vmem:[#allocation6 + $0x190] sm:$0xff]
    %v1127 = vld [vmem:[#allocation6 + $0x198] sm:$0xff]
    %v1128 = vld [vmem:[#allocation6 + $0x1a0] sm:$0xff]
    %v1129 = vld [vmem:[#allocation6 + $0x1a8] sm:$0xff]
    %v1130 = vld [vmem:[#allocation6 + $0x1b0] sm:$0xff]
    %v1131 = vld [vmem:[#allocation6 + $0x1b8] sm:$0xff]
    %v1132 = vld [vmem:[#allocation6 + $0x1c0] sm:$0xff]
    %v1133 = vld [vmem:[#allocation6 + $0x1c8] sm:$0xff]
    %v1134 = vld [vmem:[#allocation6 + $0x1d0] sm:$0xff]
    %v1135 = vld [vmem:[#allocation6 + $0x1d8] sm:$0xff]
    %v1136 = vld [vmem:[#allocation6 + $0x1e0] sm:$0xff]
    %v1137 = vld [vmem:[#allocation6 + $0x1e8] sm:$0xff]
    %v1138 = vld [vmem:[#allocation6 + $0x1f0] sm:$0xff]
    %v1139 = vld [vmem:[#allocation6 + $0x1f8] sm:$0xff]
    %v1140 = vld [vmem:[#allocation6 + $0x200] sm:$0xff]
    %v1141 = vld [vmem:[#allocation6 + $0x208] sm:$0xff]
    %v1142 = vld [vmem:[#allocation6 + $0x210] sm:$0xff]
    %v1143 = vld [vmem:[#allocation6 + $0x218] sm:$0xff]
    %v1144 = vld [vmem:[#allocation6 + $0x220] sm:$0xff]
    %v1145 = vld [vmem:[#allocation6 + $0x228] sm:$0xff]
    %v1146 = vld [vmem:[#allocation6 + $0x230] sm:$0xff]
    %v1147 = vld [vmem:[#allocation6 + $0x238] sm:$0xff]
    %v1148 = vld [vmem:[#allocation6 + $0x240] sm:$0xff]
    %v1149 = vld [vmem:[#allocation6 + $0x248] sm:$0xff]
    %v1150 = vld [vmem:[#allocation6 + $0x250] sm:$0xff]
    %v1151 = vld [vmem:[#allocation6 + $0x258] sm:$0xff]
    %v1152 = vld [vmem:[#allocation6 + $0x260] sm:$0xff]
    %v1153 = vld [vmem:[#allocation6 + $0x268] sm:$0xff]
    %v1154 = vld [vmem:[#allocation6 + $0x270] sm:$0xff]
    %v1155 = vld [vmem:[#allocation6 + $0x278] sm:$0xff]
    %v1156 = vld [vmem:[#allocation6 + $0x280] sm:$0xff]
    %v1157 = vld [vmem:[#allocation6 + $0x288] sm:$0xff]
    %v1158 = vld [vmem:[#allocation6 + $0x290] sm:$0xff]
    %v1159 = vld [vmem:[#allocation6 + $0x298] sm:$0xff]
    %v1160 = vld [vmem:[#allocation6 + $0x2a0] sm:$0xff]
    %v1161 = vld [vmem:[#allocation6 + $0x2a8] sm:$0xff]
    %v1162 = vld [vmem:[#allocation6 + $0x2b0] sm:$0xff]
    %v1163 = vld [vmem:[#allocation6 + $0x2b8] sm:$0xff]
    %v1164 = vld [vmem:[#allocation6 + $0x2c0] sm:$0xff]
    %v1165 = vld [vmem:[#allocation6 + $0x2c8] sm:$0xff]
    %v1166 = vld [vmem:[#allocation6 + $0x2d0] sm:$0xff]
    %v1167 = vld [vmem:[#allocation6 + $0x2d8] sm:$0xff]
    %v1168 = vld [vmem:[#allocation6 + $0x2e0] sm:$0xff]
    %v1169 = vld [vmem:[#allocation6 + $0x2e8] sm:$0xff]
    %v1170 = vld [vmem:[#allocation6 + $0x2f0] sm:$0xff]
    %v1171 = vld [vmem:[#allocation6 + $0x2f8] sm:$0xff]
    %v1172 = vld [vmem:[#allocation6 + $0x300] sm:$0xff]
    %v1173 = vld [vmem:[#allocation6 + $0x308] sm:$0xff]
    %v1174 = vld [vmem:[#allocation6 + $0x310] sm:$0xff]
    %v1175 = vld [vmem:[#allocation6 + $0x318] sm:$0xff]
    %v1176 = vld [vmem:[#allocation6 + $0x320] sm:$0xff]
    %v1177 = vld [vmem:[#allocation6 + $0x328] sm:$0xff]
    %v1178 = vld [vmem:[#allocation6 + $0x330] sm:$0xff]
    %v1179 = vld [vmem:[#allocation6 + $0x338] sm:$0xff]
    %v1180 = vld [vmem:[#allocation6 + $0x340] sm:$0xff]
    %v1181 = vld [vmem:[#allocation6 + $0x348] sm:$0xff]
    %v1182 = vld [vmem:[#allocation6 + $0x350] sm:$0xff]
    %v1183 = vld [vmem:[#allocation6 + $0x358] sm:$0xff]
    %v1184 = vld [vmem:[#allocation6 + $0x360] sm:$0xff]
    %v1185 = vld [vmem:[#allocation6 + $0x368] sm:$0xff]
    %v1186 = vld [vmem:[#allocation6 + $0x370] sm:$0xff]
    %v1187 = vld [vmem:[#allocation6 + $0x378] sm:$0xff]
    %v1188 = vld [vmem:[#allocation6 + $0x380] sm:$0xff]
    %v1189 = vld [vmem:[#allocation6 + $0x388] sm:$0xff]
    %v1190 = vld [vmem:[#allocation6 + $0x390] sm:$0xff]
    %v1191 = vld [vmem:[#allocation6 + $0x398] sm:$0xff]
    %v1192 = vld [vmem:[#allocation6 + $0x3a0] sm:$0xff]
    %v1193 = vld [vmem:[#allocation6 + $0x3a8] sm:$0xff]
    %v1194 = vld [vmem:[#allocation6 + $0x3b0] sm:$0xff]
    %v1195 = vld [vmem:[#allocation6 + $0x3b8] sm:$0xff]
    %v1196 = vld [vmem:[#allocation6 + $0x3c0] sm:$0xff]
    %v1197 = vld [vmem:[#allocation6 + $0x3c8] sm:$0xff]
    %v1198 = vld [vmem:[#allocation6 + $0x3d0] sm:$0xff]
    %v1199 = vld [vmem:[#allocation6 + $0x3d8] sm:$0xff]
    %v1200 = vld [vmem:[#allocation6 + $0x3e0] sm:$0xff]
    %v1201 = vld [vmem:[#allocation6 + $0x3e8] sm:$0xff]
    %v1202 = vld [vmem:[#allocation6 + $0x3f0] sm:$0xff]
    %v1203 = vld [vmem:[#allocation6 + $0x3f8] sm:$0xff]
    %v1204 = vld [vmem:[#allocation2 + $0x40] sm:$0xff]
    %v1205 = vld [vmem:[#allocation2 + $0x48] sm:$0xff]
    %s1206 = scalar_lea.vmem [#allocation6], 1024
    %v1207 = vld [vmem:[%s1206] sm:$0xff]
    %v1208 = vld [vmem:[%s1206 + $0x8] sm:$0xff]
    %v1209 = vld [vmem:[%s1206 + $0x10] sm:$0xff]
    %v1210 = vld [vmem:[%s1206 + $0x18] sm:$0xff]
    %v1211 = vld [vmem:[%s1206 + $0x20] sm:$0xff]
    %v1212 = vld [vmem:[%s1206 + $0x28] sm:$0xff]
    %v1213 = vld [vmem:[%s1206 + $0x30] sm:$0xff]
    %v1214 = vld [vmem:[%s1206 + $0x38] sm:$0xff]
    %v1215 = vld [vmem:[%s1206 + $0x40] sm:$0xff]
    %v1216 = vld [vmem:[%s1206 + $0x48] sm:$0xff]
    %v1217 = vld [vmem:[%s1206 + $0x50] sm:$0xff]
    %v1218 = vld [vmem:[%s1206 + $0x58] sm:$0xff]
    %v1219 = vld [vmem:[%s1206 + $0x60] sm:$0xff]
    %v1220 = vld [vmem:[%s1206 + $0x68] sm:$0xff]
    %v1221 = vld [vmem:[%s1206 + $0x70] sm:$0xff]
    %v1222 = vld [vmem:[%s1206 + $0x78] sm:$0xff]
    %v1223 = vld [vmem:[%s1206 + $0x80] sm:$0xff]
    %v1224 = vld [vmem:[%s1206 + $0x88] sm:$0xff]
    %v1225 = vld [vmem:[%s1206 + $0x90] sm:$0xff]
    %v1226 = vld [vmem:[%s1206 + $0x98] sm:$0xff]
    %v1227 = vld [vmem:[%s1206 + $0xa0] sm:$0xff]
    %v1228 = vld [vmem:[%s1206 + $0xa8] sm:$0xff]
    %v1229 = vld [vmem:[%s1206 + $0xb0] sm:$0xff]
    %v1230 = vld [vmem:[%s1206 + $0xb8] sm:$0xff]
    %v1231 = vld [vmem:[%s1206 + $0xc0] sm:$0xff]
    %v1232 = vld [vmem:[%s1206 + $0xc8] sm:$0xff]
    %v1233 = vld [vmem:[%s1206 + $0xd0] sm:$0xff]
    %v1234 = vld [vmem:[%s1206 + $0xd8] sm:$0xff]
    %v1235 = vld [vmem:[%s1206 + $0xe0] sm:$0xff]
    %v1236 = vld [vmem:[%s1206 + $0xe8] sm:$0xff]
    %v1237 = vld [vmem:[%s1206 + $0xf0] sm:$0xff]
    %v1238 = vld [vmem:[%s1206 + $0xf8] sm:$0xff]
    %v1239 = vld [vmem:[%s1206 + $0x100] sm:$0xff]
    %v1240 = vld [vmem:[%s1206 + $0x108] sm:$0xff]
    %v1241 = vld [vmem:[%s1206 + $0x110] sm:$0xff]
    %v1242 = vld [vmem:[%s1206 + $0x118] sm:$0xff]
    %v1243 = vld [vmem:[%s1206 + $0x120] sm:$0xff]
    %v1244 = vld [vmem:[%s1206 + $0x128] sm:$0xff]
    %v1245 = vld [vmem:[%s1206 + $0x130] sm:$0xff]
    %v1246 = vld [vmem:[%s1206 + $0x138] sm:$0xff]
    %v1247 = vld [vmem:[%s1206 + $0x140] sm:$0xff]
    %v1248 = vld [vmem:[%s1206 + $0x148] sm:$0xff]
    %v1249 = vld [vmem:[%s1206 + $0x150] sm:$0xff]
    %v1250 = vld [vmem:[%s1206 + $0x158] sm:$0xff]
    %v1251 = vld [vmem:[%s1206 + $0x160] sm:$0xff]
    %v1252 = vld [vmem:[%s1206 + $0x168] sm:$0xff]
    %v1253 = vld [vmem:[%s1206 + $0x170] sm:$0xff]
    %v1254 = vld [vmem:[%s1206 + $0x178] sm:$0xff]
    %v1255 = vld [vmem:[%s1206 + $0x180] sm:$0xff]
    %v1256 = vld [vmem:[%s1206 + $0x188] sm:$0xff]
    %v1257 = vld [vmem:[%s1206 + $0x190] sm:$0xff]
    %v1258 = vld [vmem:[%s1206 + $0x198] sm:$0xff]
    %v1259 = vld [vmem:[%s1206 + $0x1a0] sm:$0xff]
    %v1260 = vld [vmem:[%s1206 + $0x1a8] sm:$0xff]
    %v1261 = vld [vmem:[%s1206 + $0x1b0] sm:$0xff]
    %v1262 = vld [vmem:[%s1206 + $0x1b8] sm:$0xff]
    %v1263 = vld [vmem:[%s1206 + $0x1c0] sm:$0xff]
    %v1264 = vld [vmem:[%s1206 + $0x1c8] sm:$0xff]
    %v1265 = vld [vmem:[%s1206 + $0x1d0] sm:$0xff]
    %v1266 = vld [vmem:[%s1206 + $0x1d8] sm:$0xff]
    %v1267 = vld [vmem:[%s1206 + $0x1e0] sm:$0xff]
    %v1268 = vld [vmem:[%s1206 + $0x1e8] sm:$0xff]
    %v1269 = vld [vmem:[%s1206 + $0x1f0] sm:$0xff]
    %v1270 = vld [vmem:[%s1206 + $0x1f8] sm:$0xff]
    %v1271 = vld [vmem:[%s1206 + $0x200] sm:$0xff]
    %v1272 = vld [vmem:[%s1206 + $0x208] sm:$0xff]
    %v1273 = vld [vmem:[%s1206 + $0x210] sm:$0xff]
    %v1274 = vld [vmem:[%s1206 + $0x218] sm:$0xff]
    %v1275 = vld [vmem:[%s1206 + $0x220] sm:$0xff]
    %v1276 = vld [vmem:[%s1206 + $0x228] sm:$0xff]
    %v1277 = vld [vmem:[%s1206 + $0x230] sm:$0xff]
    %v1278 = vld [vmem:[%s1206 + $0x238] sm:$0xff]
    %v1279 = vld [vmem:[%s1206 + $0x240] sm:$0xff]
    %v1280 = vld [vmem:[%s1206 + $0x248] sm:$0xff]
    %v1281 = vld [vmem:[%s1206 + $0x250] sm:$0xff]
    %v1282 = vld [vmem:[%s1206 + $0x258] sm:$0xff]
    %v1283 = vld [vmem:[%s1206 + $0x260] sm:$0xff]
    %v1284 = vld [vmem:[%s1206 + $0x268] sm:$0xff]
    %v1285 = vld [vmem:[%s1206 + $0x270] sm:$0xff]
    %v1286 = vld [vmem:[%s1206 + $0x278] sm:$0xff]
    %v1287 = vld [vmem:[%s1206 + $0x280] sm:$0xff]
    %v1288 = vld [vmem:[%s1206 + $0x288] sm:$0xff]
    %v1289 = vld [vmem:[%s1206 + $0x290] sm:$0xff]
    %v1290 = vld [vmem:[%s1206 + $0x298] sm:$0xff]
    %v1291 = vld [vmem:[%s1206 + $0x2a0] sm:$0xff]
    %v1292 = vld [vmem:[%s1206 + $0x2a8] sm:$0xff]
    %v1293 = vld [vmem:[%s1206 + $0x2b0] sm:$0xff]
    %v1294 = vld [vmem:[%s1206 + $0x2b8] sm:$0xff]
    %v1295 = vld [vmem:[%s1206 + $0x2c0] sm:$0xff]
    %v1296 = vld [vmem:[%s1206 + $0x2c8] sm:$0xff]
    %v1297 = vld [vmem:[%s1206 + $0x2d0] sm:$0xff]
    %v1298 = vld [vmem:[%s1206 + $0x2d8] sm:$0xff]
    %v1299 = vld [vmem:[%s1206 + $0x2e0] sm:$0xff]
    %v1300 = vld [vmem:[%s1206 + $0x2e8] sm:$0xff]
    %v1301 = vld [vmem:[%s1206 + $0x2f0] sm:$0xff]
    %v1302 = vld [vmem:[%s1206 + $0x2f8] sm:$0xff]
    %v1303 = vld [vmem:[%s1206 + $0x300] sm:$0xff]
    %v1304 = vld [vmem:[%s1206 + $0x308] sm:$0xff]
    %v1305 = vld [vmem:[%s1206 + $0x310] sm:$0xff]
    %v1306 = vld [vmem:[%s1206 + $0x318] sm:$0xff]
    %v1307 = vld [vmem:[%s1206 + $0x320] sm:$0xff]
    %v1308 = vld [vmem:[%s1206 + $0x328] sm:$0xff]
    %v1309 = vld [vmem:[%s1206 + $0x330] sm:$0xff]
    %v1310 = vld [vmem:[%s1206 + $0x338] sm:$0xff]
    %v1311 = vld [vmem:[%s1206 + $0x340] sm:$0xff]
    %v1312 = vld [vmem:[%s1206 + $0x348] sm:$0xff]
    %v1313 = vld [vmem:[%s1206 + $0x350] sm:$0xff]
    %v1314 = vld [vmem:[%s1206 + $0x358] sm:$0xff]
    %v1315 = vld [vmem:[%s1206 + $0x360] sm:$0xff]
    %v1316 = vld [vmem:[%s1206 + $0x368] sm:$0xff]
    %v1317 = vld [vmem:[%s1206 + $0x370] sm:$0xff]
    %v1318 = vld [vmem:[%s1206 + $0x378] sm:$0xff]
    %v1319 = vld [vmem:[%s1206 + $0x380] sm:$0xff]
    %v1320 = vld [vmem:[%s1206 + $0x388] sm:$0xff]
    %v1321 = vld [vmem:[%s1206 + $0x390] sm:$0xff]
    %v1322 = vld [vmem:[%s1206 + $0x398] sm:$0xff]
    %v1323 = vld [vmem:[%s1206 + $0x3a0] sm:$0xff]
    %v1324 = vld [vmem:[%s1206 + $0x3a8] sm:$0xff]
    %v1325 = vld [vmem:[%s1206 + $0x3b0] sm:$0xff]
    %v1326 = vld [vmem:[%s1206 + $0x3b8] sm:$0xff]
    %v1327 = vld [vmem:[%s1206 + $0x3c0] sm:$0xff]
    %v1328 = vld [vmem:[%s1206 + $0x3c8] sm:$0xff]
    %v1329 = vld [vmem:[%s1206 + $0x3d0] sm:$0xff]
    %v1330 = vld [vmem:[%s1206 + $0x3d8] sm:$0xff]
    %v1331 = vld [vmem:[%s1206 + $0x3e0] sm:$0xff]
    %v1332 = vld [vmem:[%s1206 + $0x3e8] sm:$0xff]
    %v1333 = vld [vmem:[%s1206 + $0x3f0] sm:$0xff]
    %v1334 = vld [vmem:[%s1206 + $0x3f8] sm:$0xff]
    %1335 = vmatprep.subr.mxu0 %v1208
    %1336 = vmatpush1.msra.mxu0 %v1207
    %1337 = vmatprep.subr.mxu0 %v1212
    %1338 = vmatpush1.msra.mxu0 %v1211
    %1339 = vmatprep.subr.mxu0 %v1216
    %1340 = vmatpush1.msra.mxu0 %v1215
    %1341 = vmatprep.subr.mxu0 %v1220
    %1342 = vmatpush1.msra.mxu0 %v1219
    %1343 = vmatprep.subr.mxu0 %v1224
    %1344 = vmatpush1.msra.mxu0 %v1223
    %1345 = vmatprep.subr.mxu0 %v1228
    %1346 = vmatpush1.msra.mxu0 %v1227
    %1347 = vmatprep.subr.mxu0 %v1232
    %1348 = vmatpush1.msra.mxu0 %v1231
    %1349 = vmatprep.subr.mxu0 %v1236
    %1350 = vmatpush1.msra.mxu0 %v1235
    %1351 = vmatprep.subr.mxu0 %v1240
    %1352 = vmatpush1.msra.mxu0 %v1239
    %1353 = vmatprep.subr.mxu0 %v1244
    %1354 = vmatpush1.msra.mxu0 %v1243
    %1355 = vmatprep.subr.mxu0 %v1248
    %1356 = vmatpush1.msra.mxu0 %v1247
    %1357 = vmatprep.subr.mxu0 %v1252
    %1358 = vmatpush1.msra.mxu0 %v1251
    %1359 = vmatprep.subr.mxu0 %v1256
    %1360 = vmatpush1.msra.mxu0 %v1255
    %1361 = vmatprep.subr.mxu0 %v1260
    %1362 = vmatpush1.msra.mxu0 %v1259
    %1363 = vmatprep.subr.mxu0 %v1264
    %1364 = vmatpush1.msra.mxu0 %v1263
    %1365 = vmatprep.subr.mxu0 %v1268
    %1366 = vmatpush1.msra.mxu0 %v1267
    %1367 = vmatprep.subr.mxu0 %v1272
    %1368 = vmatpush1.msra.mxu0 %v1271
    %1369 = vmatprep.subr.mxu0 %v1276
    %1370 = vmatpush1.msra.mxu0 %v1275
    %1371 = vmatprep.subr.mxu0 %v1280
    %1372 = vmatpush1.msra.mxu0 %v1279
    %1373 = vmatprep.subr.mxu0 %v1284
    %1374 = vmatpush1.msra.mxu0 %v1283
    %1375 = vmatprep.subr.mxu0 %v1288
    %1376 = vmatpush1.msra.mxu0 %v1287
    %1377 = vmatprep.subr.mxu0 %v1292
    %1378 = vmatpush1.msra.mxu0 %v1291
    %1379 = vmatprep.subr.mxu0 %v1296
    %1380 = vmatpush1.msra.mxu0 %v1295
    %1381 = vmatprep.subr.mxu0 %v1300
    %1382 = vmatpush1.msra.mxu0 %v1299
    %1383 = vmatprep.subr.mxu0 %v1304
    %1384 = vmatpush1.msra.mxu0 %v1303
    %1385 = vmatprep.subr.mxu0 %v1308
    %1386 = vmatpush1.msra.mxu0 %v1307
    %1387 = vmatprep.subr.mxu0 %v1312
    %1388 = vmatpush1.msra.mxu0 %v1311
    %1389 = vmatprep.subr.mxu0 %v1316
    %1390 = vmatpush1.msra.mxu0 %v1315
    %1391 = vmatprep.subr.mxu0 %v1320
    %1392 = vmatpush1.msra.mxu0 %v1319
    %1393 = vmatprep.subr.mxu0 %v1324
    %1394 = vmatpush1.msra.mxu0 %v1323
    %1395 = vmatprep.subr.mxu0 %v1328
    %1396 = vmatpush1.msra.mxu0 %v1327
    %1397 = vmatprep.subr.mxu0 %v1332
    %1398 = vmatpush1.msra.mxu0 %v1331
    %1399 = vmatprep.mubr.f32.mxu0 %v1071
    %1400 = vmatmul.mubr.f32.gmra.mrb[0].mxu0 %v1070
    %v1401 = vpop.f32.mrb[0].mxu0
    %v1402 = vadd.f32 0.0, %v1401
    %v1403 = vpop.f32.mrb[0].mxu0
    %v1404 = vadd.f32 0.0, %v1403
    %1405 = vmatprep.mubr.f32.mxu0 %v1073
    %1406 = vmatmul.mubr.f32.gmra.mrb[0].mxu0 %v1072
    %v1407 = vpop.f32.mrb[0].mxu0
    %v1408 = vadd.f32 0.0, %v1407
    %v1409 = vpop.f32.mrb[0].mxu0
    %v1410 = vadd.f32 0.0, %v1409
    %1411 = vmatprep.mubr.f32.mxu0 %v1075
    %1412 = vmatmul.mubr.f32.gmra.mrb[0].mxu0 %v1074
    %v1413 = vpop.f32.mrb[0].mxu0
    %v1414 = vadd.f32 0.0, %v1413
    %v1415 = vpop.f32.mrb[0].mxu0
    %v1416 = vadd.f32 0.0, %v1415
    %1417 = vmatprep.mubr.f32.mxu0 %v1205
    %1418 = vmatmul.mubr.f32.gmra.mrb[0].mxu0 %v1204
    %v1419 = vpop.f32.mrb[0].mxu0
    %v1420 = vadd.f32 0.0, %v1419
    %v1421 = vpop.f32.mrb[0].mxu0
    %v1422 = vadd.f32 0.0, %v1421
    %1423 = vdwg.mxu0
    %1424 = vmatprep.subr.mxu0 %v1210
    %1425 = vmatpush1.msra.mxu0 %v1209
    %1426 = vmatprep.subr.mxu0 %v1214
    %1427 = vmatpush1.msra.mxu0 %v1213
    %1428 = vmatprep.subr.mxu0 %v1218
    %1429 = vmatpush1.msra.mxu0 %v1217
    %1430 = vmatprep.subr.mxu0 %v1222
    %1431 = vmatpush1.msra.mxu0 %v1221
    %1432 = vmatprep.subr.mxu0 %v1226
    %1433 = vmatpush1.msra.mxu0 %v1225
    %1434 = vmatprep.subr.mxu0 %v1230
    %1435 = vmatpush1.msra.mxu0 %v1229
    %1436 = vmatprep.subr.mxu0 %v1234
    %1437 = vmatpush1.msra.mxu0 %v1233
    %1438 = vmatprep.subr.mxu0 %v1238
    %1439 = vmatpush1.msra.mxu0 %v1237
    %1440 = vmatprep.subr.mxu0 %v1242
    %1441 = vmatpush1.msra.mxu0 %v1241
    %1442 = vmatprep.subr.mxu0 %v1246
    %1443 = vmatpush1.msra.mxu0 %v1245
    %1444 = vmatprep.subr.mxu0 %v1250
    %1445 = vmatpush1.msra.mxu0 %v1249
    %1446 = vmatprep.subr.mxu0 %v1254
    %1447 = vmatpush1.msra.mxu0 %v1253
    %1448 = vmatprep.subr.mxu0 %v1258
    %1449 = vmatpush1.msra.mxu0 %v1257
    %1450 = vmatprep.subr.mxu0 %v1262
    %1451 = vmatpush1.msra.mxu0 %v1261
    %1452 = vmatprep.subr.mxu0 %v1266
    %1453 = vmatpush1.msra.mxu0 %v1265
    %1454 = vmatprep.subr.mxu0 %v1270
    %1455 = vmatpush1.msra.mxu0 %v1269
    %1456 = vmatprep.subr.mxu0 %v1274
    %1457 = vmatpush1.msra.mxu0 %v1273
    %1458 = vmatprep.subr.mxu0 %v1278
    %1459 = vmatpush1.msra.mxu0 %v1277
    %1460 = vmatprep.subr.mxu0 %v1282
    %1461 = vmatpush1.msra.mxu0 %v1281
    %1462 = vmatprep.subr.mxu0 %v1286
    %1463 = vmatpush1.msra.mxu0 %v1285
    %1464 = vmatprep.subr.mxu0 %v1290
    %1465 = vmatpush1.msra.mxu0 %v1289
    %1466 = vmatprep.subr.mxu0 %v1294
    %1467 = vmatpush1.msra.mxu0 %v1293
    %1468 = vmatprep.subr.mxu0 %v1298
    %1469 = vmatpush1.msra.mxu0 %v1297
    %1470 = vmatprep.subr.mxu0 %v1302
    %1471 = vmatpush1.msra.mxu0 %v1301
    %1472 = vmatprep.subr.mxu0 %v1306
    %1473 = vmatpush1.msra.mxu0 %v1305
    %1474 = vmatprep.subr.mxu0 %v1310
    %1475 = vmatpush1.msra.mxu0 %v1309
    %1476 = vmatprep.subr.mxu0 %v1314
    %1477 = vmatpush1.msra.mxu0 %v1313
    %1478 = vmatprep.subr.mxu0 %v1318
    %1479 = vmatpush1.msra.mxu0 %v1317
    %1480 = vmatprep.subr.mxu0 %v1322
    %1481 = vmatpush1.msra.mxu0 %v1321
    %1482 = vmatprep.subr.mxu0 %v1326
    %1483 = vmatpush1.msra.mxu0 %v1325
    %1484 = vmatprep.subr.mxu0 %v1330
    %1485 = vmatpush1.msra.mxu0 %v1329
    %1486 = vmatprep.subr.mxu0 %v1334
    %1487 = vmatpush1.msra.mxu0 %v1333
    %1488 = vmatprep.mubr.f32.mxu0 %v1071
    %1489 = vmatmul.mubr.f32.gmra.mrb[0].mxu0 %v1070
    %v1490 = vpop.f32.mrb[0].mxu0
    %v1491 = vadd.f32 0.0, %v1490
    %v1492 = vpop.f32.mrb[0].mxu0
    %v1493 = vadd.f32 0.0, %v1492
    %1494 = vmatprep.mubr.f32.mxu0 %v1073
    %1495 = vmatmul.mubr.f32.gmra.mrb[0].mxu0 %v1072
    %v1496 = vpop.f32.mrb[0].mxu0
    %v1497 = vadd.f32 0.0, %v1496
    %v1498 = vpop.f32.mrb[0].mxu0
    %v1499 = vadd.f32 0.0, %v1498
    %1500 = vmatprep.mubr.f32.mxu0 %v1075
    %1501 = vmatmul.mubr.f32.gmra.mrb[0].mxu0 %v1074
    %v1502 = vpop.f32.mrb[0].mxu0
    %v1503 = vadd.f32 0.0, %v1502
    %v1504 = vpop.f32.mrb[0].mxu0
    %v1505 = vadd.f32 0.0, %v1504
    %1506 = vmatprep.mubr.f32.mxu0 %v1205
    %1507 = vmatmul.mubr.f32.gmra.mrb[0].mxu0 %v1204
    %v1508 = vpop.f32.mrb[0].mxu0
    %v1509 = vadd.f32 0.0, %v1508
    %v1510 = vpop.f32.mrb[0].mxu0
    %v1511 = vadd.f32 0.0, %v1510
    %1512 = vdwg.mxu0
    %1513 = vmatprep.subr.mxu0 %v1077
    %1514 = vmatpush1.msra.mxu0 %v1076
    %1515 = vmatprep.subr.mxu0 %v1081
    %1516 = vmatpush1.msra.mxu0 %v1080
    %1517 = vmatprep.subr.mxu0 %v1085
    %1518 = vmatpush1.msra.mxu0 %v1084
    %1519 = vmatprep.subr.mxu0 %v1089
    %1520 = vmatpush1.msra.mxu0 %v1088
    %1521 = vmatprep.subr.mxu0 %v1093
    %1522 = vmatpush1.msra.mxu0 %v1092
    %1523 = vmatprep.subr.mxu0 %v1097
    %1524 = vmatpush1.msra.mxu0 %v1096
    %1525 = vmatprep.subr.mxu0 %v1101
    %1526 = vmatpush1.msra.mxu0 %v1100
    %1527 = vmatprep.subr.mxu0 %v1105
    %1528 = vmatpush1.msra.mxu0 %v1104
    %1529 = vmatprep.subr.mxu0 %v1109
    %1530 = vmatpush1.msra.mxu0 %v1108
    %1531 = vmatprep.subr.mxu0 %v1113
    %1532 = vmatpush1.msra.mxu0 %v1112
    %1533 = vmatprep.subr.mxu0 %v1117
    %1534 = vmatpush1.msra.mxu0 %v1116
    %1535 = vmatprep.subr.mxu0 %v1121
    %1536 = vmatpush1.msra.mxu0 %v1120
    %1537 = vmatprep.subr.mxu0 %v1125
    %1538 = vmatpush1.msra.mxu0 %v1124
    %1539 = vmatprep.subr.mxu0 %v1129
    %1540 = vmatpush1.msra.mxu0 %v1128
    %1541 = vmatprep.subr.mxu0 %v1133
    %1542 = vmatpush1.msra.mxu0 %v1132
    %1543 = vmatprep.subr.mxu0 %v1137
    %1544 = vmatpush1.msra.mxu0 %v1136
    %1545 = vmatprep.subr.mxu0 %v1141
    %1546 = vmatpush1.msra.mxu0 %v1140
    %1547 = vmatprep.subr.mxu0 %v1145
    %1548 = vmatpush1.msra.mxu0 %v1144
    %1549 = vmatprep.subr.mxu0 %v1149
    %1550 = vmatpush1.msra.mxu0 %v1148
    %1551 = vmatprep.subr.mxu0 %v1153
    %1552 = vmatpush1.msra.mxu0 %v1152
    %1553 = vmatprep.subr.mxu0 %v1157
    %1554 = vmatpush1.msra.mxu0 %v1156
    %1555 = vmatprep.subr.mxu0 %v1161
    %1556 = vmatpush1.msra.mxu0 %v1160
    %1557 = vmatprep.subr.mxu0 %v1165
    %1558 = vmatpush1.msra.mxu0 %v1164
    %1559 = vmatprep.subr.mxu0 %v1169
    %1560 = vmatpush1.msra.mxu0 %v1168
    %1561 = vmatprep.subr.mxu0 %v1173
    %1562 = vmatpush1.msra.mxu0 %v1172
    %1563 = vmatprep.subr.mxu0 %v1177
    %1564 = vmatpush1.msra.mxu0 %v1176
    %1565 = vmatprep.subr.mxu0 %v1181
    %1566 = vmatpush1.msra.mxu0 %v1180
    %1567 = vmatprep.subr.mxu0 %v1185
    %1568 = vmatpush1.msra.mxu0 %v1184
    %1569 = vmatprep.subr.mxu0 %v1189
    %1570 = vmatpush1.msra.mxu0 %v1188
    %1571 = vmatprep.subr.mxu0 %v1193
    %1572 = vmatpush1.msra.mxu0 %v1192
    %1573 = vmatprep.subr.mxu0 %v1197
    %1574 = vmatpush1.msra.mxu0 %v1196
    %1575 = vmatprep.subr.mxu0 %v1201
    %1576 = vmatpush1.msra.mxu0 %v1200
    %1577 = vmatprep.mubr.f32.mxu0 %v1069
    %1578 = vmatmul.mubr.f32.gmra.mrb[0].mxu0 %v1068
    %v1579 = vpop.f32.mrb[0].mxu0
    %v1580 = vadd.f32 %v1402, %v1579
    %v1581 = vpop.f32.mrb[0].mxu0
    %v1582 = vadd.f32 %v1404, %v1581
    %1583 = vmatprep.mubr.f32.mxu0 %v1071
    %1584 = vmatmul.mubr.f32.gmra.mrb[0].mxu0 %v1070
    %v1585 = vpop.f32.mrb[0].mxu0
    %v1586 = vadd.f32 %v1408, %v1585
    %v1587 = vpop.f32.mrb[0].mxu0
    %v1588 = vadd.f32 %v1410, %v1587
    %1589 = vmatprep.mubr.f32.mxu0 %v1073
    %1590 = vmatmul.mubr.f32.gmra.mrb[0].mxu0 %v1072
    %v1591 = vpop.f32.mrb[0].mxu0
    %v1592 = vadd.f32 %v1414, %v1591
    %v1593 = vpop.f32.mrb[0].mxu0
    %v1594 = vadd.f32 %v1416, %v1593
    %1595 = vmatprep.mubr.f32.mxu0 %v1075
    %1596 = vmatmul.mubr.f32.gmra.mrb[0].mxu0 %v1074
    %v1597 = vpop.f32.mrb[0].mxu0
    %v1598 = vadd.f32 %v1420, %v1597
    %v1599 = vpop.f32.mrb[0].mxu0
    %v1600 = vadd.f32 %v1422, %v1599
    %1601 = vdwg.mxu0
    %1602 = vmatprep.subr.mxu0 %v1079
    %1603 = vmatpush1.msra.mxu0 %v1078
    %1604 = vmatprep.subr.mxu0 %v1083
    %1605 = vmatpush1.msra.mxu0 %v1082
    %1606 = vmatprep.subr.mxu0 %v1087
    %1607 = vmatpush1.msra.mxu0 %v1086
    %1608 = vmatprep.subr.mxu0 %v1091
    %1609 = vmatpush1.msra.mxu0 %v1090
    %1610 = vmatprep.subr.mxu0 %v1095
    %1611 = vmatpush1.msra.mxu0 %v1094
    %1612 = vmatprep.subr.mxu0 %v1099
    %1613 = vmatpush1.msra.mxu0 %v1098
    %1614 = vmatprep.subr.mxu0 %v1103
    %1615 = vmatpush1.msra.mxu0 %v1102
    %1616 = vmatprep.subr.mxu0 %v1107
    %1617 = vmatpush1.msra.mxu0 %v1106
    %1618 = vmatprep.subr.mxu0 %v1111
    %1619 = vmatpush1.msra.mxu0 %v1110
    %1620 = vmatprep.subr.mxu0 %v1115
    %1621 = vmatpush1.msra.mxu0 %v1114
    %1622 = vmatprep.subr.mxu0 %v1119
    %1623 = vmatpush1.msra.mxu0 %v1118
    %1624 = vmatprep.subr.mxu0 %v1123
    %1625 = vmatpush1.msra.mxu0 %v1122
    %1626 = vmatprep.subr.mxu0 %v1127
    %1627 = vmatpush1.msra.mxu0 %v1126
    %1628 = vmatprep.subr.mxu0 %v1131
    %1629 = vmatpush1.msra.mxu0 %v1130
    %1630 = vmatprep.subr.mxu0 %v1135
    %1631 = vmatpush1.msra.mxu0 %v1134
    %1632 = vmatprep.subr.mxu0 %v1139
    %1633 = vmatpush1.msra.mxu0 %v1138
    %1634 = vmatprep.subr.mxu0 %v1143
    %1635 = vmatpush1.msra.mxu0 %v1142
    %1636 = vmatprep.subr.mxu0 %v1147
    %1637 = vmatpush1.msra.mxu0 %v1146
    %1638 = vmatprep.subr.mxu0 %v1151
    %1639 = vmatpush1.msra.mxu0 %v1150
    %1640 = vmatprep.subr.mxu0 %v1155
    %1641 = vmatpush1.msra.mxu0 %v1154
    %1642 = vmatprep.subr.mxu0 %v1159
    %1643 = vmatpush1.msra.mxu0 %v1158
    %1644 = vmatprep.subr.mxu0 %v1163
    %1645 = vmatpush1.msra.mxu0 %v1162
    %1646 = vmatprep.subr.mxu0 %v1167
    %1647 = vmatpush1.msra.mxu0 %v1166
    %1648 = vmatprep.subr.mxu0 %v1171
    %1649 = vmatpush1.msra.mxu0 %v1170
    %1650 = vmatprep.subr.mxu0 %v1175
    %1651 = vmatpush1.msra.mxu0 %v1174
    %1652 = vmatprep.subr.mxu0 %v1179
    %1653 = vmatpush1.msra.mxu0 %v1178
    %1654 = vmatprep.subr.mxu0 %v1183
    %1655 = vmatpush1.msra.mxu0 %v1182
    %1656 = vmatprep.subr.mxu0 %v1187
    %1657 = vmatpush1.msra.mxu0 %v1186
    %1658 = vmatprep.subr.mxu0 %v1191
    %1659 = vmatpush1.msra.mxu0 %v1190
    %1660 = vmatprep.subr.mxu0 %v1195
    %1661 = vmatpush1.msra.mxu0 %v1194
    %1662 = vmatprep.subr.mxu0 %v1199
    %1663 = vmatpush1.msra.mxu0 %v1198
    %1664 = vmatprep.subr.mxu0 %v1203
    %1665 = vmatpush1.msra.mxu0 %v1202
    %1666 = vmatprep.mubr.f32.mxu0 %v1069
    %1667 = vmatmul.mubr.f32.gmra.mrb[0].mxu0 %v1068
    %v1668 = vpop.f32.mrb[0].mxu0
    %v1669 = vadd.f32 %v1491, %v1668
    %v1670 = vpop.f32.mrb[0].mxu0
    %v1671 = vadd.f32 %v1493, %v1670
    %1672 = vmatprep.mubr.f32.mxu0 %v1071
    %1673 = vmatmul.mubr.f32.gmra.mrb[0].mxu0 %v1070
    %v1674 = vpop.f32.mrb[0].mxu0
    %v1675 = vadd.f32 %v1497, %v1674
    %v1676 = vpop.f32.mrb[0].mxu0
    %v1677 = vadd.f32 %v1499, %v1676
    %1678 = vmatprep.mubr.f32.mxu0 %v1073
    %1679 = vmatmul.mubr.f32.gmra.mrb[0].mxu0 %v1072
    %v1680 = vpop.f32.mrb[0].mxu0
    %v1681 = vadd.f32 %v1503, %v1680
    %v1682 = vpop.f32.mrb[0].mxu0
    %v1683 = vadd.f32 %v1505, %v1682
    %1684 = vmatprep.mubr.f32.mxu0 %v1075
    %1685 = vmatmul.mubr.f32.gmra.mrb[0].mxu0 %v1074
    %v1686 = vpop.f32.mrb[0].mxu0
    %v1687 = vadd.f32 %v1509, %v1686
    %v1688 = vpop.f32.mrb[0].mxu0
    %v1689 = vadd.f32 %v1511, %v1688
    %1690 = vdwg.mxu0
    %v1691 = vld [vmem:[#allocation2 + $0x20] sm:$0xff]
    %v1692 = vld [vmem:[#allocation2 + $0x28] sm:$0xff]
    %v1693 = vld [vmem:[#allocation2 + $0x30] sm:$0xff]
    %v1694 = vld [vmem:[#allocation2 + $0x38] sm:$0xff]
    %v1695 = vld [vmem:[#allocation2 + $0x40] sm:$0xff]
    %v1696 = vld [vmem:[#allocation2 + $0x48] sm:$0xff]
    %v1697 = vld [vmem:[#allocation2 + $0x50] sm:$0xff]
    %v1698 = vld [vmem:[#allocation2 + $0x58] sm:$0xff]
    %s1699 = scalar_lea.vmem [#allocation6], 2048
    %v1700 = vld [vmem:[%s1699] sm:$0xff]
    %v1701 = vld [vmem:[%s1699 + $0x8] sm:$0xff]
    %v1702 = vld [vmem:[%s1699 + $0x10] sm:$0xff]
    %v1703 = vld [vmem:[%s1699 + $0x18] sm:$0xff]
    %v1704 = vld [vmem:[%s1699 + $0x20] sm:$0xff]
    %v1705 = vld [vmem:[%s1699 + $0x28] sm:$0xff]
    %v1706 = vld [vmem:[%s1699 + $0x30] sm:$0xff]
    %v1707 = vld [vmem:[%s1699 + $0x38] sm:$0xff]
    %v1708 = vld [vmem:[%s1699 + $0x40] sm:$0xff]
    %v1709 = vld [vmem:[%s1699 + $0x48] sm:$0xff]
    %v1710 = vld [vmem:[%s1699 + $0x50] sm:$0xff]
    %v1711 = vld [vmem:[%s1699 + $0x58] sm:$0xff]
    %v1712 = vld [vmem:[%s1699 + $0x60] sm:$0xff]
    %v1713 = vld [vmem:[%s1699 + $0x68] sm:$0xff]
    %v1714 = vld [vmem:[%s1699 + $0x70] sm:$0xff]
    %v1715 = vld [vmem:[%s1699 + $0x78] sm:$0xff]
    %v1716 = vld [vmem:[%s1699 + $0x80] sm:$0xff]
    %v1717 = vld [vmem:[%s1699 + $0x88] sm:$0xff]
    %v1718 = vld [vmem:[%s1699 + $0x90] sm:$0xff]
    %v1719 = vld [vmem:[%s1699 + $0x98] sm:$0xff]
    %v1720 = vld [vmem:[%s1699 + $0xa0] sm:$0xff]
    %v1721 = vld [vmem:[%s1699 + $0xa8] sm:$0xff]
    %v1722 = vld [vmem:[%s1699 + $0xb0] sm:$0xff]
    %v1723 = vld [vmem:[%s1699 + $0xb8] sm:$0xff]
    %v1724 = vld [vmem:[%s1699 + $0xc0] sm:$0xff]
    %v1725 = vld [vmem:[%s1699 + $0xc8] sm:$0xff]
    %v1726 = vld [vmem:[%s1699 + $0xd0] sm:$0xff]
    %v1727 = vld [vmem:[%s1699 + $0xd8] sm:$0xff]
    %v1728 = vld [vmem:[%s1699 + $0xe0] sm:$0xff]
    %v1729 = vld [vmem:[%s1699 + $0xe8] sm:$0xff]
    %v1730 = vld [vmem:[%s1699 + $0xf0] sm:$0xff]
    %v1731 = vld [vmem:[%s1699 + $0xf8] sm:$0xff]
    %v1732 = vld [vmem:[%s1699 + $0x100] sm:$0xff]
    %v1733 = vld [vmem:[%s1699 + $0x108] sm:$0xff]
    %v1734 = vld [vmem:[%s1699 + $0x110] sm:$0xff]
    %v1735 = vld [vmem:[%s1699 + $0x118] sm:$0xff]
    %v1736 = vld [vmem:[%s1699 + $0x120] sm:$0xff]
    %v1737 = vld [vmem:[%s1699 + $0x128] sm:$0xff]
    %v1738 = vld [vmem:[%s1699 + $0x130] sm:$0xff]
    %v1739 = vld [vmem:[%s1699 + $0x138] sm:$0xff]
    %v1740 = vld [vmem:[%s1699 + $0x140] sm:$0xff]
    %v1741 = vld [vmem:[%s1699 + $0x148] sm:$0xff]
    %v1742 = vld [vmem:[%s1699 + $0x150] sm:$0xff]
    %v1743 = vld [vmem:[%s1699 + $0x158] sm:$0xff]
    %v1744 = vld [vmem:[%s1699 + $0x160] sm:$0xff]
    %v1745 = vld [vmem:[%s1699 + $0x168] sm:$0xff]
    %v1746 = vld [vmem:[%s1699 + $0x170] sm:$0xff]
    %v1747 = vld [vmem:[%s1699 + $0x178] sm:$0xff]
    %v1748 = vld [vmem:[%s1699 + $0x180] sm:$0xff]
    %v1749 = vld [vmem:[%s1699 + $0x188] sm:$0xff]
    %v1750 = vld [vmem:[%s1699 + $0x190] sm:$0xff]
    %v1751 = vld [vmem:[%s1699 + $0x198] sm:$0xff]
    %v1752 = vld [vmem:[%s1699 + $0x1a0] sm:$0xff]
    %v1753 = vld [vmem:[%s1699 + $0x1a8] sm:$0xff]
    %v1754 = vld [vmem:[%s1699 + $0x1b0] sm:$0xff]
    %v1755 = vld [vmem:[%s1699 + $0x1b8] sm:$0xff]
    %v1756 = vld [vmem:[%s1699 + $0x1c0] sm:$0xff]
    %v1757 = vld [vmem:[%s1699 + $0x1c8] sm:$0xff]
    %v1758 = vld [vmem:[%s1699 + $0x1d0] sm:$0xff]
    %v1759 = vld [vmem:[%s1699 + $0x1d8] sm:$0xff]
    %v1760 = vld [vmem:[%s1699 + $0x1e0] sm:$0xff]
    %v1761 = vld [vmem:[%s1699 + $0x1e8] sm:$0xff]
    %v1762 = vld [vmem:[%s1699 + $0x1f0] sm:$0xff]
    %v1763 = vld [vmem:[%s1699 + $0x1f8] sm:$0xff]
    %v1764 = vld [vmem:[%s1699 + $0x200] sm:$0xff]
    %v1765 = vld [vmem:[%s1699 + $0x208] sm:$0xff]
    %v1766 = vld [vmem:[%s1699 + $0x210] sm:$0xff]
    %v1767 = vld [vmem:[%s1699 + $0x218] sm:$0xff]
    %v1768 = vld [vmem:[%s1699 + $0x220] sm:$0xff]
    %v1769 = vld [vmem:[%s1699 + $0x228] sm:$0xff]
    %v1770 = vld [vmem:[%s1699 + $0x230] sm:$0xff]
    %v1771 = vld [vmem:[%s1699 + $0x238] sm:$0xff]
    %v1772 = vld [vmem:[%s1699 + $0x240] sm:$0xff]
    %v1773 = vld [vmem:[%s1699 + $0x248] sm:$0xff]
    %v1774 = vld [vmem:[%s1699 + $0x250] sm:$0xff]
    %v1775 = vld [vmem:[%s1699 + $0x258] sm:$0xff]
    %v1776 = vld [vmem:[%s1699 + $0x260] sm:$0xff]
    %v1777 = vld [vmem:[%s1699 + $0x268] sm:$0xff]
    %v1778 = vld [vmem:[%s1699 + $0x270] sm:$0xff]
    %v1779 = vld [vmem:[%s1699 + $0x278] sm:$0xff]
    %v1780 = vld [vmem:[%s1699 + $0x280] sm:$0xff]
    %v1781 = vld [vmem:[%s1699 + $0x288] sm:$0xff]
    %v1782 = vld [vmem:[%s1699 + $0x290] sm:$0xff]
    %v1783 = vld [vmem:[%s1699 + $0x298] sm:$0xff]
    %v1784 = vld [vmem:[%s1699 + $0x2a0] sm:$0xff]
    %v1785 = vld [vmem:[%s1699 + $0x2a8] sm:$0xff]
    %v1786 = vld [vmem:[%s1699 + $0x2b0] sm:$0xff]
    %v1787 = vld [vmem:[%s1699 + $0x2b8] sm:$0xff]
    %v1788 = vld [vmem:[%s1699 + $0x2c0] sm:$0xff]
    %v1789 = vld [vmem:[%s1699 + $0x2c8] sm:$0xff]
    %v1790 = vld [vmem:[%s1699 + $0x2d0] sm:$0xff]
    %v1791 = vld [vmem:[%s1699 + $0x2d8] sm:$0xff]
    %v1792 = vld [vmem:[%s1699 + $0x2e0] sm:$0xff]
    %v1793 = vld [vmem:[%s1699 + $0x2e8] sm:$0xff]
    %v1794 = vld [vmem:[%s1699 + $0x2f0] sm:$0xff]
    %v1795 = vld [vmem:[%s1699 + $0x2f8] sm:$0xff]
    %v1796 = vld [vmem:[%s1699 + $0x300] sm:$0xff]
    %v1797 = vld [vmem:[%s1699 + $0x308] sm:$0xff]
    %v1798 = vld [vmem:[%s1699 + $0x310] sm:$0xff]
    %v1799 = vld [vmem:[%s1699 + $0x318] sm:$0xff]
    %v1800 = vld [vmem:[%s1699 + $0x320] sm:$0xff]
    %v1801 = vld [vmem:[%s1699 + $0x328] sm:$0xff]
    %v1802 = vld [vmem:[%s1699 + $0x330] sm:$0xff]
    %v1803 = vld [vmem:[%s1699 + $0x338] sm:$0xff]
    %v1804 = vld [vmem:[%s1699 + $0x340] sm:$0xff]
    %v1805 = vld [vmem:[%s1699 + $0x348] sm:$0xff]
    %v1806 = vld [vmem:[%s1699 + $0x350] sm:$0xff]
    %v1807 = vld [vmem:[%s1699 + $0x358] sm:$0xff]
    %v1808 = vld [vmem:[%s1699 + $0x360] sm:$0xff]
    %v1809 = vld [vmem:[%s1699 + $0x368] sm:$0xff]
    %v1810 = vld [vmem:[%s1699 + $0x370] sm:$0xff]
    %v1811 = vld [vmem:[%s1699 + $0x378] sm:$0xff]
    %v1812 = vld [vmem:[%s1699 + $0x380] sm:$0xff]
    %v1813 = vld [vmem:[%s1699 + $0x388] sm:$0xff]
    %v1814 = vld [vmem:[%s1699 + $0x390] sm:$0xff]
    %v1815 = vld [vmem:[%s1699 + $0x398] sm:$0xff]
    %v1816 = vld [vmem:[%s1699 + $0x3a0] sm:$0xff]
    %v1817 = vld [vmem:[%s1699 + $0x3a8] sm:$0xff]
    %v1818 = vld [vmem:[%s1699 + $0x3b0] sm:$0xff]
    %v1819 = vld [vmem:[%s1699 + $0x3b8] sm:$0xff]
    %v1820 = vld [vmem:[%s1699 + $0x3c0] sm:$0xff]
    %v1821 = vld [vmem:[%s1699 + $0x3c8] sm:$0xff]
    %v1822 = vld [vmem:[%s1699 + $0x3d0] sm:$0xff]
    %v1823 = vld [vmem:[%s1699 + $0x3d8] sm:$0xff]
    %v1824 = vld [vmem:[%s1699 + $0x3e0] sm:$0xff]
    %v1825 = vld [vmem:[%s1699 + $0x3e8] sm:$0xff]
    %v1826 = vld [vmem:[%s1699 + $0x3f0] sm:$0xff]
    %v1827 = vld [vmem:[%s1699 + $0x3f8] sm:$0xff]
    %1828 = vmatprep.subr.mxu0 %v1701
    %1829 = vmatpush1.msra.mxu0 %v1700
    %1830 = vmatprep.subr.mxu0 %v1705
    %1831 = vmatpush1.msra.mxu0 %v1704
    %1832 = vmatprep.subr.mxu0 %v1709
    %1833 = vmatpush1.msra.mxu0 %v1708
    %1834 = vmatprep.subr.mxu0 %v1713
    %1835 = vmatpush1.msra.mxu0 %v1712
    %1836 = vmatprep.subr.mxu0 %v1717
    %1837 = vmatpush1.msra.mxu0 %v1716
    %1838 = vmatprep.subr.mxu0 %v1721
    %1839 = vmatpush1.msra.mxu0 %v1720
    %1840 = vmatprep.subr.mxu0 %v1725
    %1841 = vmatpush1.msra.mxu0 %v1724
    %1842 = vmatprep.subr.mxu0 %v1729
    %1843 = vmatpush1.msra.mxu0 %v1728
    %1844 = vmatprep.subr.mxu0 %v1733
    %1845 = vmatpush1.msra.mxu0 %v1732
    %1846 = vmatprep.subr.mxu0 %v1737
    %1847 = vmatpush1.msra.mxu0 %v1736
    %1848 = vmatprep.subr.mxu0 %v1741
    %1849 = vmatpush1.msra.mxu0 %v1740
    %1850 = vmatprep.subr.mxu0 %v1745
    %1851 = vmatpush1.msra.mxu0 %v1744
    %1852 = vmatprep.subr.mxu0 %v1749
    %1853 = vmatpush1.msra.mxu0 %v1748
    %1854 = vmatprep.subr.mxu0 %v1753
    %1855 = vmatpush1.msra.mxu0 %v1752
    %1856 = vmatprep.subr.mxu0 %v1757
    %1857 = vmatpush1.msra.mxu0 %v1756
    %1858 = vmatprep.subr.mxu0 %v1761
    %1859 = vmatpush1.msra.mxu0 %v1760
    %1860 = vmatprep.subr.mxu0 %v1765
    %1861 = vmatpush1.msra.mxu0 %v1764
    %1862 = vmatprep.subr.mxu0 %v1769
    %1863 = vmatpush1.msra.mxu0 %v1768
    %1864 = vmatprep.subr.mxu0 %v1773
    %1865 = vmatpush1.msra.mxu0 %v1772
    %1866 = vmatprep.subr.mxu0 %v1777
    %1867 = vmatpush1.msra.mxu0 %v1776
    %1868 = vmatprep.subr.mxu0 %v1781
    %1869 = vmatpush1.msra.mxu0 %v1780
    %1870 = vmatprep.subr.mxu0 %v1785
    %1871 = vmatpush1.msra.mxu0 %v1784
    %1872 = vmatprep.subr.mxu0 %v1789
    %1873 = vmatpush1.msra.mxu0 %v1788
    %1874 = vmatprep.subr.mxu0 %v1793
    %1875 = vmatpush1.msra.mxu0 %v1792
    %1876 = vmatprep.subr.mxu0 %v1797
    %1877 = vmatpush1.msra.mxu0 %v1796
    %1878 = vmatprep.subr.mxu0 %v1801
    %1879 = vmatpush1.msra.mxu0 %v1800
    %1880 = vmatprep.subr.mxu0 %v1805
    %1881 = vmatpush1.msra.mxu0 %v1804
    %1882 = vmatprep.subr.mxu0 %v1809
    %1883 = vmatpush1.msra.mxu0 %v1808
    %1884 = vmatprep.subr.mxu0 %v1813
    %1885 = vmatpush1.msra.mxu0 %v1812
    %1886 = vmatprep.subr.mxu0 %v1817
    %1887 = vmatpush1.msra.mxu0 %v1816
    %1888 = vmatprep.subr.mxu0 %v1821
    %1889 = vmatpush1.msra.mxu0 %v1820
    %1890 = vmatprep.subr.mxu0 %v1825
    %1891 = vmatpush1.msra.mxu0 %v1824
    %1892 = vmatprep.mubr.f32.mxu0 %v1692
    %1893 = vmatmul.mubr.f32.gmra.mrb[0].mxu0 %v1691
    %v1894 = vpop.f32.mrb[0].mxu0
    %v1895 = vadd.f32 0.0, %v1894
    %v1896 = vpop.f32.mrb[0].mxu0
    %v1897 = vadd.f32 0.0, %v1896
    %1898 = vmatprep.mubr.f32.mxu0 %v1694
    %1899 = vmatmul.mubr.f32.gmra.mrb[0].mxu0 %v1693
    %v1900 = vpop.f32.mrb[0].mxu0
    %v1901 = vadd.f32 0.0, %v1900
    %v1902 = vpop.f32.mrb[0].mxu0
    %v1903 = vadd.f32 0.0, %v1902
    %1904 = vmatprep.mubr.f32.mxu0 %v1696
    %1905 = vmatmul.mubr.f32.gmra.mrb[0].mxu0 %v1695
    %v1906 = vpop.f32.mrb[0].mxu0
    %v1907 = vadd.f32 0.0, %v1906
    %v1908 = vpop.f32.mrb[0].mxu0
    %v1909 = vadd.f32 0.0, %v1908
    %1910 = vmatprep.mubr.f32.mxu0 %v1698
    %1911 = vmatmul.mubr.f32.gmra.mrb[0].mxu0 %v1697
    %v1912 = vpop.f32.mrb[0].mxu0
    %v1913 = vadd.f32 0.0, %v1912
    %v1914 = vpop.f32.mrb[0].mxu0
    %v1915 = vadd.f32 0.0, %v1914
    %1916 = vdwg.mxu0
    %1917 = vmatprep.subr.mxu0 %v1703
    %1918 = vmatpush1.msra.mxu0 %v1702
    %1919 = vmatprep.subr.mxu0 %v1707
    %1920 = vmatpush1.msra.mxu0 %v1706
    %1921 = vmatprep.subr.mxu0 %v1711
    %1922 = vmatpush1.msra.mxu0 %v1710
    %1923 = vmatprep.subr.mxu0 %v1715
    %1924 = vmatpush1.msra.mxu0 %v1714
    %1925 = vmatprep.subr.mxu0 %v1719
    %1926 = vmatpush1.msra.mxu0 %v1718
    %1927 = vmatprep.subr.mxu0 %v1723
    %1928 = vmatpush1.msra.mxu0 %v1722
    %1929 = vmatprep.subr.mxu0 %v1727
    %1930 = vmatpush1.msra.mxu0 %v1726
    %1931 = vmatprep.subr.mxu0 %v1731
    %1932 = vmatpush1.msra.mxu0 %v1730
    %1933 = vmatprep.subr.mxu0 %v1735
    %1934 = vmatpush1.msra.mxu0 %v1734
    %1935 = vmatprep.subr.mxu0 %v1739
    %1936 = vmatpush1.msra.mxu0 %v1738
    %1937 = vmatprep.subr.mxu0 %v1743
    %1938 = vmatpush1.msra.mxu0 %v1742
    %1939 = vmatprep.subr.mxu0 %v1747
    %1940 = vmatpush1.msra.mxu0 %v1746
    %1941 = vmatprep.subr.mxu0 %v1751
    %1942 = vmatpush1.msra.mxu0 %v1750
    %1943 = vmatprep.subr.mxu0 %v1755
    %1944 = vmatpush1.msra.mxu0 %v1754
    %1945 = vmatprep.subr.mxu0 %v1759
    %1946 = vmatpush1.msra.mxu0 %v1758
    %1947 = vmatprep.subr.mxu0 %v1763
    %1948 = vmatpush1.msra.mxu0 %v1762
    %1949 = vmatprep.subr.mxu0 %v1767
    %1950 = vmatpush1.msra.mxu0 %v1766
    %1951 = vmatprep.subr.mxu0 %v1771
    %1952 = vmatpush1.msra.mxu0 %v1770
    %1953 = vmatprep.subr.mxu0 %v1775
    %1954 = vmatpush1.msra.mxu0 %v1774
    %1955 = vmatprep.subr.mxu0 %v1779
    %1956 = vmatpush1.msra.mxu0 %v1778
    %1957 = vmatprep.subr.mxu0 %v1783
    %1958 = vmatpush1.msra.mxu0 %v1782
    %1959 = vmatprep.subr.mxu0 %v1787
    %1960 = vmatpush1.msra.mxu0 %v1786
    %1961 = vmatprep.subr.mxu0 %v1791
    %1962 = vmatpush1.msra.mxu0 %v1790
    %1963 = vmatprep.subr.mxu0 %v1795
    %1964 = vmatpush1.msra.mxu0 %v1794
    %1965 = vmatprep.subr.mxu0 %v1799
    %1966 = vmatpush1.msra.mxu0 %v1798
    %1967 = vmatprep.subr.mxu0 %v1803
    %1968 = vmatpush1.msra.mxu0 %v1802
    %1969 = vmatprep.subr.mxu0 %v1807
    %1970 = vmatpush1.msra.mxu0 %v1806
    %1971 = vmatprep.subr.mxu0 %v1811
    %1972 = vmatpush1.msra.mxu0 %v1810
    %1973 = vmatprep.subr.mxu0 %v1815
    %1974 = vmatpush1.msra.mxu0 %v1814
    %1975 = vmatprep.subr.mxu0 %v1819
    %1976 = vmatpush1.msra.mxu0 %v1818
    %1977 = vmatprep.subr.mxu0 %v1823
    %1978 = vmatpush1.msra.mxu0 %v1822
    %1979 = vmatprep.subr.mxu0 %v1827
    %1980 = vmatpush1.msra.mxu0 %v1826
    %1981 = vmatprep.mubr.f32.mxu0 %v1692
    %1982 = vmatmul.mubr.f32.gmra.mrb[0].mxu0 %v1691
    %v1983 = vpop.f32.mrb[0].mxu0
    %v1984 = vadd.f32 0.0, %v1983
    %v1985 = vpop.f32.mrb[0].mxu0
    %v1986 = vadd.f32 0.0, %v1985
    %1987 = vmatprep.mubr.f32.mxu0 %v1694
    %1988 = vmatmul.mubr.f32.gmra.mrb[0].mxu0 %v1693
    %v1989 = vpop.f32.mrb[0].mxu0
    %v1990 = vadd.f32 0.0, %v1989
    %v1991 = vpop.f32.mrb[0].mxu0
    %v1992 = vadd.f32 0.0, %v1991
    %1993 = vmatprep.mubr.f32.mxu0 %v1696
    %1994 = vmatmul.mubr.f32.gmra.mrb[0].mxu0 %v1695
    %v1995 = vpop.f32.mrb[0].mxu0
    %v1996 = vadd.f32 0.0, %v1995
    %v1997 = vpop.f32.mrb[0].mxu0
    %v1998 = vadd.f32 0.0, %v1997
    %1999 = vmatprep.mubr.f32.mxu0 %v1698
    %2000 = vmatmul.mubr.f32.gmra.mrb[0].mxu0 %v1697
    %v2001 = vpop.f32.mrb[0].mxu0
    %v2002 = vadd.f32 0.0, %v2001
    %v2003 = vpop.f32.mrb[0].mxu0
    %v2004 = vadd.f32 0.0, %v2003
    %2005 = vdwg.mxu0
    %v2006 = vadd.f32 %v1580, %v1895
    %v2007 = vadd.f32 %v1582, %v1897
    %v2008 = vadd.f32 %v1669, %v1984
    %v2009 = vadd.f32 %v1671, %v1986
    %v2010 = vadd.f32 %v1586, %v1901
    %v2011 = vadd.f32 %v1588, %v1903
    %v2012 = vadd.f32 %v1675, %v1990
    %v2013 = vadd.f32 %v1677, %v1992
    %v2014 = vadd.f32 %v1592, %v1907
    %v2015 = vadd.f32 %v1594, %v1909
    %v2016 = vadd.f32 %v1681, %v1996
    %v2017 = vadd.f32 %v1683, %v1998
    %v2018 = vadd.f32 %v1598, %v1913
    %v2019 = vadd.f32 %v1600, %v1915
    %v2020 = vadd.f32 %v1687, %v2002
    %v2021 = vadd.f32 %v1689, %v2004
    %v2022 = vmax.f32 %v2006, %v2007
    %v2023 = vmax.f32 %v2010, %v2011
    %v2024 = vmax.f32 %v2022, %v2023
    %v2025 = vmax.f32 %v2008, %v2009
    %v2026 = vmax.f32 %v2012, %v2013
    %v2027 = vmax.f32 %v2025, %v2026
    %v2028 = vmax.f32 %v2014, %v2015
    %v2029 = vmax.f32 %v2018, %v2019
    %v2030 = vmax.f32 %v2028, %v2029
    %v2031 = vmax.f32 %v2016, %v2017
    %v2032 = vmax.f32 %v2020, %v2021
    %v2033 = vmax.f32 %v2031, %v2032
    %v2034 = vld [vmem:[#allocation8] sm:$0xf]
    %v2036 = vlaneseq
    %v2037 = vshrl.u32 %v2036, 7
    %v2038 = vsub.s32 0, %v2037
    %v2039 = vrot.slane %v2034, %v2038
    %v2040 = vlaneseq
    %v2041 = vshrl.u32 %v2040, 7
    %v2042 = vsub.s32 1, %v2041
    %v2043 = vrot.slane %v2034, %v2042
    %v2044 = vlaneseq
    %v2045 = vshrl.u32 %v2044, 7
    %v2046 = vsub.s32 2, %v2045
    %v2047 = vrot.slane %v2034, %v2046
    %v2048 = vlaneseq
    %v2049 = vshrl.u32 %v2048, 7
    %v2050 = vsub.s32 3, %v2049
    %v2051 = vrot.slane %v2034, %v2050
    %v2056 = vadd.f32 %v2024, %v2039
    %v2057 = vadd.f32 %v2027, %v2043
    %v2058 = vadd.f32 %v2030, %v2047
    %v2059 = vadd.f32 %v2033, %v2051
    %v2060 = vmax.f32 %v2056, 0.0
    %v2061 = vmax.f32 %v2057, 0.0
    %v2062 = vmax.f32 %v2058, 0.0
    %v2063 = vmax.f32 %v2059, 0.0
    %v2064 = vld [vmem:[#allocation9] sm:$0xff]
    %v2065 = vld [vmem:[#allocation9 + $0x8] sm:$0xff]
    %v2066 = vld [vmem:[#allocation9 + $0x10] sm:$0xff]
    %v2067 = vld [vmem:[#allocation9 + $0x18] sm:$0xff]
    %v2068 = vld [vmem:[#allocation9 + $0x20] sm:$0xff]
    %v2069 = vld [vmem:[#allocation9 + $0x28] sm:$0xff]
    %v2070 = vld [vmem:[#allocation9 + $0x30] sm:$0xff]
    %v2071 = vld [vmem:[#allocation9 + $0x38] sm:$0xff]
    %v2072 = vld [vmem:[#allocation9 + $0x40] sm:$0xff]
    %v2073 = vld [vmem:[#allocation9 + $0x48] sm:$0xff]
    %v2074 = vld [vmem:[#allocation9 + $0x50] sm:$0xff]
    %v2075 = vld [vmem:[#allocation9 + $0x58] sm:$0xff]
    %v2076 = vld [vmem:[#allocation9 + $0x60] sm:$0xff]
    %v2077 = vld [vmem:[#allocation9 + $0x68] sm:$0xff]
    %v2078 = vld [vmem:[#allocation9 + $0x70] sm:$0xff]
    %v2079 = vld [vmem:[#allocation9 + $0x78] sm:$0xff]
    %v2080 = vld [vmem:[#allocation9 + $0x80] sm:$0xff]
    %v2081 = vld [vmem:[#allocation9 + $0x88] sm:$0xff]
    %v2082 = vld [vmem:[#allocation9 + $0x90] sm:$0xff]
    %v2083 = vld [vmem:[#allocation9 + $0x98] sm:$0xff]
    %v2084 = vld [vmem:[#allocation9 + $0xa0] sm:$0xff]
    %v2085 = vld [vmem:[#allocation9 + $0xa8] sm:$0xff]
    %v2086 = vld [vmem:[#allocation9 + $0xb0] sm:$0xff]
    %v2087 = vld [vmem:[#allocation9 + $0xb8] sm:$0xff]
    %v2088 = vld [vmem:[#allocation9 + $0xc0] sm:$0xff]
    %v2089 = vld [vmem:[#allocation9 + $0xc8] sm:$0xff]
    %v2090 = vld [vmem:[#allocation9 + $0xd0] sm:$0xff]
    %v2091 = vld [vmem:[#allocation9 + $0xd8] sm:$0xff]
    %v2092 = vld [vmem:[#allocation9 + $0xe0] sm:$0xff]
    %v2093 = vld [vmem:[#allocation9 + $0xe8] sm:$0xff]
    %v2094 = vld [vmem:[#allocation9 + $0xf0] sm:$0xff]
    %v2095 = vld [vmem:[#allocation9 + $0xf8] sm:$0xff]
    %v2096 = vld [vmem:[#allocation9 + $0x100] sm:$0xff]
    %v2097 = vld [vmem:[#allocation9 + $0x108] sm:$0xff]
    %v2098 = vld [vmem:[#allocation9 + $0x110] sm:$0xff]
    %v2099 = vld [vmem:[#allocation9 + $0x118] sm:$0xff]
    %v2100 = vld [vmem:[#allocation9 + $0x120] sm:$0xff]
    %v2101 = vld [vmem:[#allocation9 + $0x128] sm:$0xff]
    %v2102 = vld [vmem:[#allocation9 + $0x130] sm:$0xff]
    %v2103 = vld [vmem:[#allocation9 + $0x138] sm:$0xff]
    %v2104 = vld [vmem:[#allocation9 + $0x140] sm:$0xff]
    %v2105 = vld [vmem:[#allocation9 + $0x148] sm:$0xff]
    %v2106 = vld [vmem:[#allocation9 + $0x150] sm:$0xff]
    %v2107 = vld [vmem:[#allocation9 + $0x158] sm:$0xff]
    %v2108 = vld [vmem:[#allocation9 + $0x160] sm:$0xff]
    %v2109 = vld [vmem:[#allocation9 + $0x168] sm:$0xff]
    %v2110 = vld [vmem:[#allocation9 + $0x170] sm:$0xff]
    %v2111 = vld [vmem:[#allocation9 + $0x178] sm:$0xff]
    %v2112 = vld [vmem:[#allocation9 + $0x180] sm:$0xff]
    %v2113 = vld [vmem:[#allocation9 + $0x188] sm:$0xff]
    %v2114 = vld [vmem:[#allocation9 + $0x190] sm:$0xff]
    %v2115 = vld [vmem:[#allocation9 + $0x198] sm:$0xff]
    %v2116 = vld [vmem:[#allocation9 + $0x1a0] sm:$0xff]
    %v2117 = vld [vmem:[#allocation9 + $0x1a8] sm:$0xff]
    %v2118 = vld [vmem:[#allocation9 + $0x1b0] sm:$0xff]
    %v2119 = vld [vmem:[#allocation9 + $0x1b8] sm:$0xff]
    %v2120 = vld [vmem:[#allocation9 + $0x1c0] sm:$0xff]
    %v2121 = vld [vmem:[#allocation9 + $0x1c8] sm:$0xff]
    %v2122 = vld [vmem:[#allocation9 + $0x1d0] sm:$0xff]
    %v2123 = vld [vmem:[#allocation9 + $0x1d8] sm:$0xff]
    %v2124 = vld [vmem:[#allocation9 + $0x1e0] sm:$0xff]
    %v2125 = vld [vmem:[#allocation9 + $0x1e8] sm:$0xff]
    %v2126 = vld [vmem:[#allocation9 + $0x1f0] sm:$0xff]
    %v2127 = vld [vmem:[#allocation9 + $0x1f8] sm:$0xff]
    %v2128 = vld [vmem:[#allocation11] sm:$0x1]
    %v2130 = vlaneseq
    %v2131 = vshrl.u32 %v2130, 7
    %v2132 = vsub.s32 0, %v2131
    %v2133 = vrot.slane %v2128, %v2132
    %2135 = vmatprep.subr.mxu0 0.0
    %2136 = vmatpush1.msra.mxu0 %v2064
    %2137 = vmatprep.subr.mxu0 0.0
    %2138 = vmatpush1.msra.mxu0 %v2065
    %2139 = vmatprep.subr.mxu0 0.0
    %2140 = vmatpush1.msra.mxu0 %v2066
    %2141 = vmatprep.subr.mxu0 0.0
    %2142 = vmatpush1.msra.mxu0 %v2067
    %2143 = vmatprep.subr.mxu0 0.0
    %2144 = vmatpush1.msra.mxu0 %v2068
    %2145 = vmatprep.subr.mxu0 0.0
    %2146 = vmatpush1.msra.mxu0 %v2069
    %2147 = vmatprep.subr.mxu0 0.0
    %2148 = vmatpush1.msra.mxu0 %v2070
    %2149 = vmatprep.subr.mxu0 0.0
    %2150 = vmatpush1.msra.mxu0 %v2071
    %2151 = vmatprep.subr.mxu0 0.0
    %2152 = vmatpush1.msra.mxu0 %v2072
    %2153 = vmatprep.subr.mxu0 0.0
    %2154 = vmatpush1.msra.mxu0 %v2073
    %2155 = vmatprep.subr.mxu0 0.0
    %2156 = vmatpush1.msra.mxu0 %v2074
    %2157 = vmatprep.subr.mxu0 0.0
    %2158 = vmatpush1.msra.mxu0 %v2075
    %2159 = vmatprep.subr.mxu0 0.0
    %2160 = vmatpush1.msra.mxu0 %v2076
    %2161 = vmatprep.subr.mxu0 0.0
    %2162 = vmatpush1.msra.mxu0 %v2077
    %2163 = vmatprep.subr.mxu0 0.0
    %2164 = vmatpush1.msra.mxu0 %v2078
    %2165 = vmatprep.subr.mxu0 0.0
    %2166 = vmatpush1.msra.mxu0 %v2079
    %2167 = vmatprep.subr.mxu0 0.0
    %2168 = vmatpush1.msra.mxu0 %v2080
    %2169 = vmatprep.subr.mxu0 0.0
    %2170 = vmatpush1.msra.mxu0 %v2081
    %2171 = vmatprep.subr.mxu0 0.0
    %2172 = vmatpush1.msra.mxu0 %v2082
    %2173 = vmatprep.subr.mxu0 0.0
    %2174 = vmatpush1.msra.mxu0 %v2083
    %2175 = vmatprep.subr.mxu0 0.0
    %2176 = vmatpush1.msra.mxu0 %v2084
    %2177 = vmatprep.subr.mxu0 0.0
    %2178 = vmatpush1.msra.mxu0 %v2085
    %2179 = vmatprep.subr.mxu0 0.0
    %2180 = vmatpush1.msra.mxu0 %v2086
    %2181 = vmatprep.subr.mxu0 0.0
    %2182 = vmatpush1.msra.mxu0 %v2087
    %2183 = vmatprep.subr.mxu0 0.0
    %2184 = vmatpush1.msra.mxu0 %v2088
    %2185 = vmatprep.subr.mxu0 0.0
    %2186 = vmatpush1.msra.mxu0 %v2089
    %2187 = vmatprep.subr.mxu0 0.0
    %2188 = vmatpush1.msra.mxu0 %v2090
    %2189 = vmatprep.subr.mxu0 0.0
    %2190 = vmatpush1.msra.mxu0 %v2091
    %2191 = vmatprep.subr.mxu0 0.0
    %2192 = vmatpush1.msra.mxu0 %v2092
    %2193 = vmatprep.subr.mxu0 0.0
    %2194 = vmatpush1.msra.mxu0 %v2093
    %2195 = vmatprep.subr.mxu0 0.0
    %2196 = vmatpush1.msra.mxu0 %v2094
    %2197 = vmatprep.subr.mxu0 0.0
    %2198 = vmatpush1.msra.mxu0 %v2095
    %2199 = vmatprep.mubr.f32.mxu0 %v2061
    %2200 = vmatmul.mubr.f32.gmra.mrb[0].mxu0 %v2060
    %v2201 = vpop.f32.mrb[0].mxu0
    %v2202 = vadd.f32 %v2133, %v2201
    %v2203 = vpop.f32.mrb[0].mxu0
    %2204 = vdwg.mxu0
    %2205 = vmatprep.subr.mxu0 0.0
    %2206 = vmatpush1.msra.mxu0 %v2096
    %2207 = vmatprep.subr.mxu0 0.0
    %2208 = vmatpush1.msra.mxu0 %v2097
    %2209 = vmatprep.subr.mxu0 0.0
    %2210 = vmatpush1.msra.mxu0 %v2098
    %2211 = vmatprep.subr.mxu0 0.0
    %2212 = vmatpush1.msra.mxu0 %v2099
    %2213 = vmatprep.subr.mxu0 0.0
    %2214 = vmatpush1.msra.mxu0 %v2100
    %2215 = vmatprep.subr.mxu0 0.0
    %2216 = vmatpush1.msra.mxu0 %v2101
    %2217 = vmatprep.subr.mxu0 0.0
    %2218 = vmatpush1.msra.mxu0 %v2102
    %2219 = vmatprep.subr.mxu0 0.0
    %2220 = vmatpush1.msra.mxu0 %v2103
    %2221 = vmatprep.subr.mxu0 0.0
    %2222 = vmatpush1.msra.mxu0 %v2104
    %2223 = vmatprep.subr.mxu0 0.0
    %2224 = vmatpush1.msra.mxu0 %v2105
    %2225 = vmatprep.subr.mxu0 0.0
    %2226 = vmatpush1.msra.mxu0 %v2106
    %2227 = vmatprep.subr.mxu0 0.0
    %2228 = vmatpush1.msra.mxu0 %v2107
    %2229 = vmatprep.subr.mxu0 0.0
    %2230 = vmatpush1.msra.mxu0 %v2108
    %2231 = vmatprep.subr.mxu0 0.0
    %2232 = vmatpush1.msra.mxu0 %v2109
    %2233 = vmatprep.subr.mxu0 0.0
    %2234 = vmatpush1.msra.mxu0 %v2110
    %2235 = vmatprep.subr.mxu0 0.0
    %2236 = vmatpush1.msra.mxu0 %v2111
    %2237 = vmatprep.subr.mxu0 0.0
    %2238 = vmatpush1.msra.mxu0 %v2112
    %2239 = vmatprep.subr.mxu0 0.0
    %2240 = vmatpush1.msra.mxu0 %v2113
    %2241 = vmatprep.subr.mxu0 0.0
    %2242 = vmatpush1.msra.mxu0 %v2114
    %2243 = vmatprep.subr.mxu0 0.0
    %2244 = vmatpush1.msra.mxu0 %v2115
    %2245 = vmatprep.subr.mxu0 0.0
    %2246 = vmatpush1.msra.mxu0 %v2116
    %2247 = vmatprep.subr.mxu0 0.0
    %2248 = vmatpush1.msra.mxu0 %v2117
    %2249 = vmatprep.subr.mxu0 0.0
    %2250 = vmatpush1.msra.mxu0 %v2118
    %2251 = vmatprep.subr.mxu0 0.0
    %2252 = vmatpush1.msra.mxu0 %v2119
    %2253 = vmatprep.subr.mxu0 0.0
    %2254 = vmatpush1.msra.mxu0 %v2120
    %2255 = vmatprep.subr.mxu0 0.0
    %2256 = vmatpush1.msra.mxu0 %v2121
    %2257 = vmatprep.subr.mxu0 0.0
    %2258 = vmatpush1.msra.mxu0 %v2122
    %2259 = vmatprep.subr.mxu0 0.0
    %2260 = vmatpush1.msra.mxu0 %v2123
    %2261 = vmatprep.subr.mxu0 0.0
    %2262 = vmatpush1.msra.mxu0 %v2124
    %2263 = vmatprep.subr.mxu0 0.0
    %2264 = vmatpush1.msra.mxu0 %v2125
    %2265 = vmatprep.subr.mxu0 0.0
    %2266 = vmatpush1.msra.mxu0 %v2126
    %2267 = vmatprep.subr.mxu0 0.0
    %2268 = vmatpush1.msra.mxu0 %v2127
    %2269 = vmatprep.mubr.f32.mxu0 %v2063
    %2270 = vmatmul.mubr.f32.gmra.mrb[0].mxu0 %v2062
    %v2271 = vpop.f32.mrb[0].mxu0
    %v2272 = vadd.f32 %v2202, %v2271
    %v2273 = vpop.f32.mrb[0].mxu0
    %2274 = vdwg.mxu0
    %2275 = vst [vmem:[#allocation12] sm:$0xff] %v2272
    %v2276 = vlaneseq
    %v2277 = vand.u32 %v2276, 127
    %vm2278 = vcmp.lt.s32.totalorder %v2277, 4
    %v2279 = vsel %vm2278, %v2272, -inf
    %2280 = vmax.xlane.f32.xlu0 %v2279
    %v2281 = vpop.xlane.xlu0 %2280
    %vm2282 = vcmp.eq.f32.partialorder %v2279, %v2281
    %v2283 = vsel %vm2282, %v2277, 128
    %v2284 = vand.u32 %v2283, 65535
    %v2285 = vshra.s32 %v2283, 16
    %v2286 = vcvt.s32.f32 %v2284
    %v2287 = vcvt.s32.f32 %v2285
    %2288 = vmin.xlane.f32.xlu0 %v2287
    %v2289 = vpop.xlane.xlu0 %2288
    %vm2290 = vcmp.eq.f32.partialorder %v2287, %v2289
    %v2291 = vsel %vm2290, %v2286, inf
    %2292 = vmin.xlane.f32.xlu0 %v2291
    %v2293 = vpop.xlane.xlu0 %2292
    %v2294 = vcvt.f32.s32 %v2293
    %v2295 = vcvt.f32.s32 %v2289
    %v2296 = vshll.u32 %v2295, 16
    %v2297 = vadd.s32 %v2296, %v2294
    %vm2298 = vcmp.eq.s32.totalorder %v2277, %v2297
    %v2299 = vsel %vm2298, 1, 0
    %v2300 = vcvt.s32.f32 %v2299
    %2301 = vst [vmem:[#allocation13] sm:$0xff] %v2300
    // Predicated region
    $region50: #{tpu_custom_call.1} parent=1 // pred_check
      _
    $region51: #{tpu_custom_call.1} parent=1 // pred_check_branch
      %2303 = sbr.rel (0) target = $region53
    $region52: #{tpu_custom_call.1} parent=1 // pred_region
      %s2305 = ssub.s32 128, 128
      %2306 = vsyncadd [#allocation5], %s2305
      %s2308 = sshll.u32 [#allocation12], 4
      %s2309 = int_to_ptr.vmem [resolvable:$true] %s2308
      %2311 = dma.vmem_to_hbm [thread:$0]  %s2309, 128, %s7, [#allocation5]
    $region53: #{tpu_custom_call.1} parent=1 // pred_fallthru
      _
    // Predicated region
    $region54: #{tpu_custom_call.1} parent=1 // pred_check
      _
    $region55: #{tpu_custom_call.1} parent=1 // pred_check_branch
      %2313 = sbr.rel (0) target = $region57
    $region56: #{tpu_custom_call.1} parent=1 // pred_region
      %s2315 = ssub.s32 128, 128
      %2316 = vsyncadd [#allocation14], %s2315
      %s2318 = sshll.u32 [#allocation13], 4
      %s2319 = int_to_ptr.vmem [resolvable:$true] %s2318
      %2321 = dma.vmem_to_hbm [thread:$0]  %s2319, 128, %s8, [#allocation14]
    $region57: #{tpu_custom_call.1} parent=1 // pred_fallthru
      _
    // Predicated region
    $region58: #{tpu_custom_call.1} parent=1 // pred_check
      _
    $region59: #{tpu_custom_call.1} parent=1 // pred_check_branch
      %2323 = sbr.rel (0) target = $region61
    $region60: #{tpu_custom_call.1} parent=1 // pred_region
      %2324 = dma.done [#allocation5], 128
    $region61: #{tpu_custom_call.1} parent=1 // pred_fallthru
      _
    // Predicated region
    $region62: #{tpu_custom_call.1} parent=1 // pred_check
      _
    $region63: #{tpu_custom_call.1} parent=1 // pred_check_branch
      %2326 = sbr.rel (0) target = $region65
    $region64: #{tpu_custom_call.1} parent=1 // pred_region
      %2327 = dma.done [#allocation14], 128
    $region65: #{tpu_custom_call.1} parent=1 // pred_fallthru
      _
    %2328 = vsyncpa [#allocation4], 1
    %2329 = vsyncpa [#allocation7], 1
    %2330 = vsyncpa [#allocation10], 1
    %2331 = vsyncpa [#allocation5], 1
    %2332 = vsyncpa [#allocation14], 1

</llo_original>
